<compile_context>
chip_gen: v7x
topology: tpu7x:2x2x1
jax: 0.10.0
libtpu: 0.0.40
codegen_flags: <defaults>
</compile_context>

<pallas_src>
import functools

import jax
import jax.numpy as jnp
from jax import lax
from jax.experimental import pallas as pl
from jax.experimental.pallas import tpu as pltpu

HIDDEN = 128


def _round_up(x, m):
    return (x + m - 1) // m * m


def _layout(in_features, hidden=HIDDEN):
    """Row offsets of every section inside the packed [R, hidden] param slab."""
    in_pad = _round_up(in_features, 8)   # W1 rows, 8-sublane aligned
    row_w2 = in_pad                      # [hidden, hidden]
    row_b1 = row_w2 + hidden             # [1, hidden]  (8-row stride keeps alignment)
    row_b2 = row_b1 + 8                  # [1, hidden]
    row_w3 = row_b2 + 8                  # [1, hidden]  (w3.T)
    row_b3 = row_w3 + 8                  # scalar at column 0
    total = _round_up(row_b3 + 8, 8)
    return in_pad, row_w2, row_b1, row_b2, row_w3, row_b3, total


def pack_params(params, in_features, hidden=HIDDEN):
    """Pack all Critic weights/biases into a single [R, hidden] f32 slab."""
    in_pad, row_w2, row_b1, row_b2, row_w3, row_b3, total = _layout(in_features, hidden)
    slab = jnp.zeros((total, hidden), jnp.float32)
    slab = slab.at[0:in_features, :].set(params["w1"])
    slab = slab.at[row_w2:row_w2 + hidden, :].set(params["w2"])
    slab = slab.at[row_b1, :].set(params["b1"])
    slab = slab.at[row_b2, :].set(params["b2"])
    slab = slab.at[row_w3, :].set(params["w3"][:, 0])
    slab = slab.at[row_b3, 0].set(params["b3"][0])
    return slab


def _make_kernel(in_pad, hidden, row_w2, row_b1, row_b2, row_w3, row_b3):
    def kernel(x_ref, slab_ref, out_ref):
        # layer 1: x @ W1 + b1, ReLU   (single K=in_pad matmul)
        x = x_ref[...]                                        # [tb, in_pad]
        w1 = slab_ref[0:in_pad, :]                            # [in_pad, hidden]
        h = jnp.dot(x, w1, preferred_element_type=jnp.float32)
        h = jnp.maximum(h + slab_ref[row_b1:row_b1 + 1, :], 0.0)

        # layer 2: h @ W2 + b2, ReLU
        w2 = slab_ref[row_w2:row_w2 + hidden, :]              # [hidden, hidden]
        h = jnp.dot(h, w2, preferred_element_type=jnp.float32)
        h = jnp.maximum(h + slab_ref[row_b2:row_b2 + 1, :], 0.0)

        # layer 3 (output width 1): compute as a lane-dense [1, tb] row on the
        # MXU:  y_row = w3_row · h^T + b3
        w3 = slab_ref[row_w3:row_w3 + 1, :]                   # [1, hidden]
        y = lax.dot_general(w3, h, (((1,), (1,)), ((), ())),
                            preferred_element_type=jnp.float32)   # [1, tb]
        y = y + slab_ref[row_b3:row_b3 + 1, 0:1]              # scalar bias
        out_ref[...] = y.astype(out_ref.dtype)

    return kernel


def _num_tensorcores():
    """2 grid steps on v7x (2 TensorCores/chip), 1 on v5e/v6e."""
    try:
        kind = jax.devices()[0].device_kind.lower()
    except Exception:
        return 1
    return 2 if "7" in kind else 1


@functools.partial(jax.jit, static_argnames=("block_b",))
def critic_forward(x, slab, *, block_b=None):
    """x: [B, in_features] (the already-concatenated s/a[/m] features).
    slab: packed parameters from pack_params(). Returns [B, 1]."""
    B, in_features = x.shape
    hidden = slab.shape[1]
    in_pad, row_w2, row_b1, row_b2, row_w3, row_b3, total = _layout(in_features, hidden)
    assert slab.shape[0] == total, (slab.shape, total)

    # pad feature dim to the 8-row-aligned W1 slab slice (zeros -> no effect)
    if in_pad != in_features:
        x = jnp.pad(x, ((0, 0), (0, in_pad - in_features)))

    # batch tile: one grid step per TensorCore unless overridden
    if block_b is None:
        n_steps = _num_tensorcores()
        tb = _round_up(pl.cdiv(_round_up(B, 8), n_steps), 8)
    else:
        tb = _round_up(min(block_b, _round_up(B, 8)), 8)
    if tb % 128 != 0:
        tb = _round_up(B, 8)            # tiny batch: single lane-aligned tile
    b_pad = _round_up(B, tb)
    if b_pad != B:
        x = jnp.pad(x, ((0, b_pad - B), (0, 0)))
    n_steps = b_pad // tb

    out = pl.pallas_call(
        _make_kernel(in_pad, hidden, row_w2, row_b1, row_b2, row_w3, row_b3),
        # lane-dense output: one [1, b_pad] row; step i writes lanes [i*tb, (i+1)*tb)
        out_shape=jax.ShapeDtypeStruct((1, b_pad), jnp.float32),
        grid_spec=pltpu.PrefetchScalarGridSpec(
            num_scalar_prefetch=0,
            grid=(n_steps,),
            in_specs=[
                pl.BlockSpec((tb, in_pad), lambda i: (i, 0)),
                # whole-slab block, constant index_map -> weights stay VMEM-resident
                pl.BlockSpec(slab.shape, lambda i: (0, 0)),
            ],
            out_specs=pl.BlockSpec((1, tb), lambda i: (0, i)),
        ),
        compiler_params=pltpu.CompilerParams(
            dimension_semantics=("parallel",)),
    )(x, slab)

    # (1, b_pad) row -> (B, 1) column; a single-row reshape is order-preserving
    return out.reshape(b_pad, 1)[:B]


def init_params(key, input_size, hidden=HIDDEN):
    """Synthetic params, torch.nn.Linear default init range. Weights [in,out]."""
    dims = [(input_size, hidden), (hidden, hidden), (hidden, 1)]
    params = {}
    for i, (fin, fout) in enumerate(dims, start=1):
        key, kw, kb = jax.random.split(key, 3)
        bound = 1.0 / (fin ** 0.5)
        params[f"w{i}"] = jax.random.uniform(kw, (fin, fout), jnp.float32, -bound, bound)
        params[f"b{i}"] = jax.random.uniform(kb, (fout,), jnp.float32, -bound, bound)
    return params


def critic_reference(s_parts, a_parts, params):
    """Pure-JAX reference of Critic.forward(s, a)."""
    x = jnp.concatenate(list(s_parts) + list(a_parts), axis=1)
    h = jax.nn.relu(x @ params["w1"] + params["b1"])
    h = jax.nn.relu(h @ params["w2"] + params["b2"])
    return h @ params["w3"] + params["b3"]


if __name__ == "__main__":
    key = jax.random.PRNGKey(0)

    batch = 1024          # >=128 rows per call to fill the MXU / one tile per core
    obs_part = 16         # observation split into two per-agent parts
    act_part = 8          # action split into two per-agent parts
    observation_space = 2 * obs_part
    action_space = 2 * act_part
    input_size = observation_space + action_space

    key, k1, k2, k3, k4, kp = jax.random.split(key, 6)
    s = (jax.random.normal(k1, (batch, obs_part), jnp.float32),
         jax.random.normal(k2, (batch, obs_part), jnp.float32))
    a = (jax.random.normal(k3, (batch, act_part), jnp.float32),
         jax.random.normal(k4, (batch, act_part), jnp.float32))

    params = init_params(kp, input_size)
    slab = pack_params(params, input_size)

    # torch: x = cat(cat(list(s),1), cat(list(a),1), 1) -- done in the wrapper,
    # XLA fuses it; the kernel sees a single [B, 48] operand.
    x = jnp.concatenate(list(s) + list(a), axis=1)

    out = critic_forward(x, slab)
    jax.block_until_ready(out)

    ref = critic_reference(s, a, params)
    assert out.shape == (batch, 1), out.shape
    max_err = float(jnp.max(jnp.abs(out - ref)))
    assert jnp.allclose(out, ref, atol=1e-4, rtol=1e-4), max_err

    print("KERNEL_OK")
</pallas_src>

<mosaic_0001>
module attributes {stable_mosaic.version = 11 : i64} {
  func.func @kernel(%arg0: i32, %arg1: memref<1024x48xf32, #tpu.memory_space<vmem>>, %arg2: memref<208x128xf32, #tpu.memory_space<vmem>>, %arg3: memref<1x1024xf32, #tpu.memory_space<vmem>>) attributes {dimension_semantics = [#tpu.dimension_semantics<parallel>], iteration_bounds = array<i64: 1>, scalar_prefetch = 0 : i64, scratch_operands = 0 : i64, tpu.core_type = #tpu.core_type<tc>, window_params = [{transform_indices = @transform_0, window_bounds = array<i64: 1024, 48>}, {pipeline_mode = #tpu.pipeline_mode<synchronous>, transform_indices = @transform_1, window_bounds = array<i64: 208, 128>}, {transform_indices = @transform_2, window_bounds = array<i64: 1, 1024>}]} {
    %c0 = arith.constant 0 : index
    %c0_0 = arith.constant 0 : index
    %0 = vector.load %arg1[%c0, %c0_0] : memref<1024x48xf32, #tpu.memory_space<vmem>>, vector<1024x48xf32>
    %c0_1 = arith.constant 0 : index
    %c0_2 = arith.constant 0 : index
    %1 = vector.load %arg2[%c0_1, %c0_2] : memref<208x128xf32, #tpu.memory_space<vmem>>, vector<48x128xf32>
    %cst = arith.constant dense<0.000000e+00> : vector<1024x128xf32>
    %2 = tpu.matmul %0, %1, %cst {dimension_numbers = #tpu.dot_dimension_numbers<[1], [0], [0], [1], [0, 0, 1, 1], [], []>} : vector<1024x48xf32>, vector<48x128xf32>, vector<1024x128xf32> -> vector<1024x128xf32>
    %c176 = arith.constant 176 : index
    %c0_3 = arith.constant 0 : index
    %3 = vector.load %arg2[%c176, %c0_3] : memref<208x128xf32, #tpu.memory_space<vmem>>, vector<1x128xf32>
    %4 = vector.broadcast %3 : vector<1x128xf32> to vector<1024x128xf32>
    %5 = arith.addf %2, %4 : vector<1024x128xf32>
    %cst_4 = arith.constant 0.000000e+00 : f32
    %6 = vector.broadcast %cst_4 : f32 to vector<1024x128xf32>
    %7 = arith.maximumf %5, %6 : vector<1024x128xf32>
    %c48 = arith.constant 48 : index
    %c0_5 = arith.constant 0 : index
    %8 = vector.load %arg2[%c48, %c0_5] : memref<208x128xf32, #tpu.memory_space<vmem>>, vector<128x128xf32>
    %cst_6 = arith.constant dense<0.000000e+00> : vector<1024x128xf32>
    %9 = tpu.matmul %7, %8, %cst_6 {dimension_numbers = #tpu.dot_dimension_numbers<[1], [0], [0], [1], [0, 0, 1, 1], [], []>} : vector<1024x128xf32>, vector<128x128xf32>, vector<1024x128xf32> -> vector<1024x128xf32>
    %c184 = arith.constant 184 : index
    %c0_7 = arith.constant 0 : index
    %10 = vector.load %arg2[%c184, %c0_7] : memref<208x128xf32, #tpu.memory_space<vmem>>, vector<1x128xf32>
    %11 = vector.broadcast %10 : vector<1x128xf32> to vector<1024x128xf32>
    %12 = arith.addf %9, %11 : vector<1024x128xf32>
    %cst_8 = arith.constant 0.000000e+00 : f32
    %13 = vector.broadcast %cst_8 : f32 to vector<1024x128xf32>
    %14 = arith.maximumf %12, %13 : vector<1024x128xf32>
    %c192 = arith.constant 192 : index
    %c0_9 = arith.constant 0 : index
    %15 = vector.load %arg2[%c192, %c0_9] : memref<208x128xf32, #tpu.memory_space<vmem>>, vector<1x128xf32>
    %cst_10 = arith.constant dense<0.000000e+00> : vector<1x1024xf32>
    %16 = tpu.matmul %15, %14, %cst_10 {dimension_numbers = #tpu.dot_dimension_numbers<[1], [1], [0], [0], [0, 0, 1, 0], [], []>} : vector<1x128xf32>, vector<1024x128xf32>, vector<1x1024xf32> -> vector<1x1024xf32>
    %c200 = arith.constant 200 : index
    %c0_11 = arith.constant 0 : index
    %17 = vector.load %arg2[%c200, %c0_11] : memref<208x128xf32, #tpu.memory_space<vmem>>, vector<1x1xf32>
    %18 = vector.broadcast %17 : vector<1x1xf32> to vector<1x1024xf32>
    %19 = arith.addf %16, %18 : vector<1x1024xf32>
    %c0_12 = arith.constant 0 : index
    %c0_13 = arith.constant 0 : index
    %20 = vector.load %arg3[%c0_12, %c0_13] : memref<1x1024xf32, #tpu.memory_space<vmem>>, vector<1x1024xf32>
    tpu.vector_store %arg3[%c0_12, %c0_13], %19 {strides = array<i32>} : memref<1x1024xf32, #tpu.memory_space<vmem>>, vector<1x1024xf32>,
    return
  }
  func.func @transform_0(%arg0: i32) -> (i32, i32) {
    %c0_i32 = arith.constant 0 : i32
    %c0_i32_0 = arith.constant 0 : i32
    return %arg0, %c0_i32 : i32, i32
  }
  func.func @transform_1(%arg0: i32) -> (i32, i32) {
    %c0_i32 = arith.constant 0 : i32
    %c0_i32_0 = arith.constant 0 : i32
    %c0_i32_1 = arith.constant 0 : i32
    return %c0_i32, %c0_i32_0 : i32, i32
  }
  func.func @transform_2(%arg0: i32) -> (i32, i32) {
    %c0_i32 = arith.constant 0 : i32
    %c0_i32_0 = arith.constant 0 : i32
    return %c0_i32, %arg0 : i32, i32
  }
}

</mosaic_0001>

<llo_original>
// kernel: critic_forward.1
$region0: #{critic_forward.1}
  #allocation0 [shape = 'u32[]', space=smem, size = 0x4, offset = 0x4, fixed_abs, tag = 'smem constant byte address 0x4 - core index']
  #allocation1 [shape = 'u32[144,128]{1,0:T(1,128)}', space=vmem, size = 0x12000, scoped, tag = 'internal scratch']
  %s0 = inlined_call_operand.vmem [shape: f32[1024,48], index: 0, kind: input, shape index: {}]
  %s1 = inlined_call_operand.vmem [shape: f32[208,128], index: 1, kind: input, shape index: {}]
  %s2 = inlined_call_operand.hbm [shape: f32[1,1024], index: 2, kind: output, shape index: {}]
  %s3 = sld [smem:[#allocation0]]
  $region18: #{critic_forward.1} parent=0
    _
  %s5 = ssub.s32 1, %s3
  %s6 = scalar_select 0, %s5, %s3
  $region1: #{critic_forward.1} parent=0
    #allocation2 [shape = 'u8[4096]{0}', space=vmem, size = 0x1000, scoped, tag = 'output window, operand 0, single buffered']
    #allocation3 [shape = 's32[1]{0}', space=sflag, size = 0x4, scoped, tag = 'scoped memory for critic_forward.1']
    %7 = vsyncpa [#allocation3], 0
    // Predicated region
    $region2: #{critic_forward.1} parent=1 // pred_check
      _
    $region3: #{critic_forward.1} parent=1 // pred_check_branch
      %9 = sbr.rel (0) target = $region5
    $region4: #{critic_forward.1} parent=1 // pred_region
      _
    $region5: #{critic_forward.1} parent=1 // pred_fallthru
      _
    // Predicated region
    $region6: #{critic_forward.1} parent=1 // pred_check
      _
    $region7: #{critic_forward.1} parent=1 // pred_check_branch
      %11 = sbr.rel (0) target = $region9
    $region8: #{critic_forward.1} parent=1 // pred_region
      _
    $region9: #{critic_forward.1} parent=1 // pred_fallthru
      _
    %v12 = vld [vmem:[%s0] sm:$0xff]
    %v13 = vld [vmem:[%s0 + $0x8] sm:$0xff]
    %v14 = vld [vmem:[%s0 + $0x10] sm:$0xff]
    %v15 = vld [vmem:[%s0 + $0x18] sm:$0xff]
    %v16 = vld [vmem:[%s0 + $0x20] sm:$0xff]
    %v17 = vld [vmem:[%s0 + $0x28] sm:$0xff]
    %v18 = vld [vmem:[%s0 + $0x30] sm:$0xff]
    %v19 = vld [vmem:[%s0 + $0x38] sm:$0xff]
    %v20 = vld [vmem:[%s0 + $0x40] sm:$0xff]
    %v21 = vld [vmem:[%s0 + $0x48] sm:$0xff]
    %v22 = vld [vmem:[%s0 + $0x50] sm:$0xff]
    %v23 = vld [vmem:[%s0 + $0x58] sm:$0xff]
    %v24 = vld [vmem:[%s0 + $0x60] sm:$0xff]
    %v25 = vld [vmem:[%s0 + $0x68] sm:$0xff]
    %v26 = vld [vmem:[%s0 + $0x70] sm:$0xff]
    %v27 = vld [vmem:[%s0 + $0x78] sm:$0xff]
    %v28 = vld [vmem:[%s0 + $0x80] sm:$0xff]
    %v29 = vld [vmem:[%s0 + $0x88] sm:$0xff]
    %v30 = vld [vmem:[%s0 + $0x90] sm:$0xff]
    %v31 = vld [vmem:[%s0 + $0x98] sm:$0xff]
    %v32 = vld [vmem:[%s0 + $0xa0] sm:$0xff]
    %v33 = vld [vmem:[%s0 + $0xa8] sm:$0xff]
    %v34 = vld [vmem:[%s0 + $0xb0] sm:$0xff]
    %v35 = vld [vmem:[%s0 + $0xb8] sm:$0xff]
    %v36 = vld [vmem:[%s0 + $0xc0] sm:$0xff]
    %v37 = vld [vmem:[%s0 + $0xc8] sm:$0xff]
    %v38 = vld [vmem:[%s0 + $0xd0] sm:$0xff]
    %v39 = vld [vmem:[%s0 + $0xd8] sm:$0xff]
    %v40 = vld [vmem:[%s0 + $0xe0] sm:$0xff]
    %v41 = vld [vmem:[%s0 + $0xe8] sm:$0xff]
    %v42 = vld [vmem:[%s0 + $0xf0] sm:$0xff]
    %v43 = vld [vmem:[%s0 + $0xf8] sm:$0xff]
    %v44 = vld [vmem:[%s0 + $0x100] sm:$0xff]
    %v45 = vld [vmem:[%s0 + $0x108] sm:$0xff]
    %v46 = vld [vmem:[%s0 + $0x110] sm:$0xff]
    %v47 = vld [vmem:[%s0 + $0x118] sm:$0xff]
    %v48 = vld [vmem:[%s0 + $0x120] sm:$0xff]
    %v49 = vld [vmem:[%s0 + $0x128] sm:$0xff]
    %v50 = vld [vmem:[%s0 + $0x130] sm:$0xff]
    %v51 = vld [vmem:[%s0 + $0x138] sm:$0xff]
    %v52 = vld [vmem:[%s0 + $0x140] sm:$0xff]
    %v53 = vld [vmem:[%s0 + $0x148] sm:$0xff]
    %v54 = vld [vmem:[%s0 + $0x150] sm:$0xff]
    %v55 = vld [vmem:[%s0 + $0x158] sm:$0xff]
    %v56 = vld [vmem:[%s0 + $0x160] sm:$0xff]
    %v57 = vld [vmem:[%s0 + $0x168] sm:$0xff]
    %v58 = vld [vmem:[%s0 + $0x170] sm:$0xff]
    %v59 = vld [vmem:[%s0 + $0x178] sm:$0xff]
    %v60 = vld [vmem:[%s0 + $0x180] sm:$0xff]
    %v61 = vld [vmem:[%s0 + $0x188] sm:$0xff]
    %v62 = vld [vmem:[%s0 + $0x190] sm:$0xff]
    %v63 = vld [vmem:[%s0 + $0x198] sm:$0xff]
    %v64 = vld [vmem:[%s0 + $0x1a0] sm:$0xff]
    %v65 = vld [vmem:[%s0 + $0x1a8] sm:$0xff]
    %v66 = vld [vmem:[%s0 + $0x1b0] sm:$0xff]
    %v67 = vld [vmem:[%s0 + $0x1b8] sm:$0xff]
    %v68 = vld [vmem:[%s0 + $0x1c0] sm:$0xff]
    %v69 = vld [vmem:[%s0 + $0x1c8] sm:$0xff]
    %v70 = vld [vmem:[%s0 + $0x1d0] sm:$0xff]
    %v71 = vld [vmem:[%s0 + $0x1d8] sm:$0xff]
    %v72 = vld [vmem:[%s0 + $0x1e0] sm:$0xff]
    %v73 = vld [vmem:[%s0 + $0x1e8] sm:$0xff]
    %v74 = vld [vmem:[%s0 + $0x1f0] sm:$0xff]
    %v75 = vld [vmem:[%s0 + $0x1f8] sm:$0xff]
    %v76 = vld [vmem:[%s0 + $0x200] sm:$0xff]
    %v77 = vld [vmem:[%s0 + $0x208] sm:$0xff]
    %v78 = vld [vmem:[%s0 + $0x210] sm:$0xff]
    %v79 = vld [vmem:[%s0 + $0x218] sm:$0xff]
    %v80 = vld [vmem:[%s0 + $0x220] sm:$0xff]
    %v81 = vld [vmem:[%s0 + $0x228] sm:$0xff]
    %v82 = vld [vmem:[%s0 + $0x230] sm:$0xff]
    %v83 = vld [vmem:[%s0 + $0x238] sm:$0xff]
    %v84 = vld [vmem:[%s0 + $0x240] sm:$0xff]
    %v85 = vld [vmem:[%s0 + $0x248] sm:$0xff]
    %v86 = vld [vmem:[%s0 + $0x250] sm:$0xff]
    %v87 = vld [vmem:[%s0 + $0x258] sm:$0xff]
    %v88 = vld [vmem:[%s0 + $0x260] sm:$0xff]
    %v89 = vld [vmem:[%s0 + $0x268] sm:$0xff]
    %v90 = vld [vmem:[%s0 + $0x270] sm:$0xff]
    %v91 = vld [vmem:[%s0 + $0x278] sm:$0xff]
    %v92 = vld [vmem:[%s0 + $0x280] sm:$0xff]
    %v93 = vld [vmem:[%s0 + $0x288] sm:$0xff]
    %v94 = vld [vmem:[%s0 + $0x290] sm:$0xff]
    %v95 = vld [vmem:[%s0 + $0x298] sm:$0xff]
    %v96 = vld [vmem:[%s0 + $0x2a0] sm:$0xff]
    %v97 = vld [vmem:[%s0 + $0x2a8] sm:$0xff]
    %v98 = vld [vmem:[%s0 + $0x2b0] sm:$0xff]
    %v99 = vld [vmem:[%s0 + $0x2b8] sm:$0xff]
    %v100 = vld [vmem:[%s0 + $0x2c0] sm:$0xff]
    %v101 = vld [vmem:[%s0 + $0x2c8] sm:$0xff]
    %v102 = vld [vmem:[%s0 + $0x2d0] sm:$0xff]
    %v103 = vld [vmem:[%s0 + $0x2d8] sm:$0xff]
    %v104 = vld [vmem:[%s0 + $0x2e0] sm:$0xff]
    %v105 = vld [vmem:[%s0 + $0x2e8] sm:$0xff]
    %v106 = vld [vmem:[%s0 + $0x2f0] sm:$0xff]
    %v107 = vld [vmem:[%s0 + $0x2f8] sm:$0xff]
    %v108 = vld [vmem:[%s0 + $0x300] sm:$0xff]
    %v109 = vld [vmem:[%s0 + $0x308] sm:$0xff]
    %v110 = vld [vmem:[%s0 + $0x310] sm:$0xff]
    %v111 = vld [vmem:[%s0 + $0x318] sm:$0xff]
    %v112 = vld [vmem:[%s0 + $0x320] sm:$0xff]
    %v113 = vld [vmem:[%s0 + $0x328] sm:$0xff]
    %v114 = vld [vmem:[%s0 + $0x330] sm:$0xff]
    %v115 = vld [vmem:[%s0 + $0x338] sm:$0xff]
    %v116 = vld [vmem:[%s0 + $0x340] sm:$0xff]
    %v117 = vld [vmem:[%s0 + $0x348] sm:$0xff]
    %v118 = vld [vmem:[%s0 + $0x350] sm:$0xff]
    %v119 = vld [vmem:[%s0 + $0x358] sm:$0xff]
    %v120 = vld [vmem:[%s0 + $0x360] sm:$0xff]
    %v121 = vld [vmem:[%s0 + $0x368] sm:$0xff]
    %v122 = vld [vmem:[%s0 + $0x370] sm:$0xff]
    %v123 = vld [vmem:[%s0 + $0x378] sm:$0xff]
    %v124 = vld [vmem:[%s0 + $0x380] sm:$0xff]
    %v125 = vld [vmem:[%s0 + $0x388] sm:$0xff]
    %v126 = vld [vmem:[%s0 + $0x390] sm:$0xff]
    %v127 = vld [vmem:[%s0 + $0x398] sm:$0xff]
    %v128 = vld [vmem:[%s0 + $0x3a0] sm:$0xff]
    %v129 = vld [vmem:[%s0 + $0x3a8] sm:$0xff]
    %v130 = vld [vmem:[%s0 + $0x3b0] sm:$0xff]
    %v131 = vld [vmem:[%s0 + $0x3b8] sm:$0xff]
    %v132 = vld [vmem:[%s0 + $0x3c0] sm:$0xff]
    %v133 = vld [vmem:[%s0 + $0x3c8] sm:$0xff]
    %v134 = vld [vmem:[%s0 + $0x3d0] sm:$0xff]
    %v135 = vld [vmem:[%s0 + $0x3d8] sm:$0xff]
    %v136 = vld [vmem:[%s0 + $0x3e0] sm:$0xff]
    %v137 = vld [vmem:[%s0 + $0x3e8] sm:$0xff]
    %v138 = vld [vmem:[%s0 + $0x3f0] sm:$0xff]
    %v139 = vld [vmem:[%s0 + $0x3f8] sm:$0xff]
    %v140 = vld [vmem:[%s1] sm:$0xff]
    %v141 = vld [vmem:[%s1 + $0x8] sm:$0xff]
    %v142 = vld [vmem:[%s1 + $0x10] sm:$0xff]
    %v143 = vld [vmem:[%s1 + $0x18] sm:$0xff]
    %v144 = vld [vmem:[%s1 + $0x20] sm:$0xff]
    %v145 = vld [vmem:[%s1 + $0x28] sm:$0xff]
    %v146 = vld [vmem:[%s1 + $0xb0] sm:$0x1]
    %v147 = vlaneseq
    %v148 = vshrl.u32 %v147, 7
    %v149 = vsub.s32 0, %v148
    %v150 = vrot.slane %v146, %v149
    %vm151 = vcmask 392192
    %v153 = vsel %vm151, %v12, 0
    %v156 = vsel %vm151, %v13, 0
    %v159 = vsel %vm151, %v14, 0
    %v162 = vsel %vm151, %v15, 0
    %v165 = vsel %vm151, %v16, 0
    %v168 = vsel %vm151, %v17, 0
    %v171 = vsel %vm151, %v18, 0
    %v174 = vsel %vm151, %v19, 0
    %v177 = vsel %vm151, %v20, 0
    %v180 = vsel %vm151, %v21, 0
    %v183 = vsel %vm151, %v22, 0
    %v186 = vsel %vm151, %v23, 0
    %v189 = vsel %vm151, %v24, 0
    %v192 = vsel %vm151, %v25, 0
    %v195 = vsel %vm151, %v26, 0
    %v198 = vsel %vm151, %v27, 0
    %v201 = vsel %vm151, %v28, 0
    %v204 = vsel %vm151, %v29, 0
    %v207 = vsel %vm151, %v30, 0
    %v210 = vsel %vm151, %v31, 0
    %v213 = vsel %vm151, %v32, 0
    %v216 = vsel %vm151, %v33, 0
    %v219 = vsel %vm151, %v34, 0
    %v222 = vsel %vm151, %v35, 0
    %v225 = vsel %vm151, %v36, 0
    %v228 = vsel %vm151, %v37, 0
    %v231 = vsel %vm151, %v38, 0
    %v234 = vsel %vm151, %v39, 0
    %v237 = vsel %vm151, %v40, 0
    %v240 = vsel %vm151, %v41, 0
    %v243 = vsel %vm151, %v42, 0
    %v246 = vsel %vm151, %v43, 0
    %v249 = vsel %vm151, %v44, 0
    %v252 = vsel %vm151, %v45, 0
    %v255 = vsel %vm151, %v46, 0
    %v258 = vsel %vm151, %v47, 0
    %v261 = vsel %vm151, %v48, 0
    %v264 = vsel %vm151, %v49, 0
    %v267 = vsel %vm151, %v50, 0
    %v270 = vsel %vm151, %v51, 0
    %v273 = vsel %vm151, %v52, 0
    %v276 = vsel %vm151, %v53, 0
    %v279 = vsel %vm151, %v54, 0
    %v282 = vsel %vm151, %v55, 0
    %v285 = vsel %vm151, %v56, 0
    %v288 = vsel %vm151, %v57, 0
    %v291 = vsel %vm151, %v58, 0
    %v294 = vsel %vm151, %v59, 0
    %v297 = vsel %vm151, %v60, 0
    %v300 = vsel %vm151, %v61, 0
    %v303 = vsel %vm151, %v62, 0
    %v306 = vsel %vm151, %v63, 0
    %v309 = vsel %vm151, %v64, 0
    %v312 = vsel %vm151, %v65, 0
    %v315 = vsel %vm151, %v66, 0
    %v318 = vsel %vm151, %v67, 0
    %v321 = vsel %vm151, %v68, 0
    %v324 = vsel %vm151, %v69, 0
    %v327 = vsel %vm151, %v70, 0
    %v330 = vsel %vm151, %v71, 0
    %v333 = vsel %vm151, %v72, 0
    %v336 = vsel %vm151, %v73, 0
    %v339 = vsel %vm151, %v74, 0
    %v342 = vsel %vm151, %v75, 0
    %v345 = vsel %vm151, %v76, 0
    %v348 = vsel %vm151, %v77, 0
    %v351 = vsel %vm151, %v78, 0
    %v354 = vsel %vm151, %v79, 0
    %v357 = vsel %vm151, %v80, 0
    %v360 = vsel %vm151, %v81, 0
    %v363 = vsel %vm151, %v82, 0
    %v366 = vsel %vm151, %v83, 0
    %v369 = vsel %vm151, %v84, 0
    %v372 = vsel %vm151, %v85, 0
    %v375 = vsel %vm151, %v86, 0
    %v378 = vsel %vm151, %v87, 0
    %v381 = vsel %vm151, %v88, 0
    %v384 = vsel %vm151, %v89, 0
    %v387 = vsel %vm151, %v90, 0
    %v390 = vsel %vm151, %v91, 0
    %v393 = vsel %vm151, %v92, 0
    %v396 = vsel %vm151, %v93, 0
    %v399 = vsel %vm151, %v94, 0
    %v402 = vsel %vm151, %v95, 0
    %v405 = vsel %vm151, %v96, 0
    %v408 = vsel %vm151, %v97, 0
    %v411 = vsel %vm151, %v98, 0
    %v414 = vsel %vm151, %v99, 0
    %v417 = vsel %vm151, %v100, 0
    %v420 = vsel %vm151, %v101, 0
    %v423 = vsel %vm151, %v102, 0
    %v426 = vsel %vm151, %v103, 0
    %v429 = vsel %vm151, %v104, 0
    %v432 = vsel %vm151, %v105, 0
    %v435 = vsel %vm151, %v106, 0
    %v438 = vsel %vm151, %v107, 0
    %v441 = vsel %vm151, %v108, 0
    %v444 = vsel %vm151, %v109, 0
    %v447 = vsel %vm151, %v110, 0
    %v450 = vsel %vm151, %v111, 0
    %v453 = vsel %vm151, %v112, 0
    %v456 = vsel %vm151, %v113, 0
    %v459 = vsel %vm151, %v114, 0
    %v462 = vsel %vm151, %v115, 0
    %v465 = vsel %vm151, %v116, 0
    %v468 = vsel %vm151, %v117, 0
    %v471 = vsel %vm151, %v118, 0
    %v474 = vsel %vm151, %v119, 0
    %v477 = vsel %vm151, %v120, 0
    %v480 = vsel %vm151, %v121, 0
    %v483 = vsel %vm151, %v122, 0
    %v486 = vsel %vm151, %v123, 0
    %v489 = vsel %vm151, %v124, 0
    %v492 = vsel %vm151, %v125, 0
    %v495 = vsel %vm151, %v126, 0
    %v498 = vsel %vm151, %v127, 0
    %v501 = vsel %vm151, %v128, 0
    %v504 = vsel %vm151, %v129, 0
    %v507 = vsel %vm151, %v130, 0
    %v510 = vsel %vm151, %v131, 0
    %v513 = vsel %vm151, %v132, 0
    %v516 = vsel %vm151, %v133, 0
    %v519 = vsel %vm151, %v134, 0
    %v522 = vsel %vm151, %v135, 0
    %v525 = vsel %vm151, %v136, 0
    %v528 = vsel %vm151, %v137, 0
    %v531 = vsel %vm151, %v138, 0
    %v534 = vsel %vm151, %v139, 0
    %536 = vmatprep.subr.mxu0 0.0
    %537 = vmatpush1.msra.mxu0 %v140
    %538 = vmatprep.subr.mxu0 0.0
    %539 = vmatpush1.msra.mxu0 %v141
    %540 = vmatprep.subr.mxu0 0.0
    %541 = vmatpush1.msra.mxu0 %v142
    %542 = vmatprep.subr.mxu0 0.0
    %543 = vmatpush1.msra.mxu0 %v143
    %544 = vmatprep.subr.mxu0 0.0
    %545 = vmatpush1.msra.mxu0 %v144
    %546 = vmatprep.subr.mxu0 0.0
    %547 = vmatpush1.msra.mxu0 %v145
    %548 = vmatprep.subr.mxu0 0.0
    %549 = vmatpush1.msra.mxu0 0.0
    %550 = vmatprep.subr.mxu0 0.0
    %551 = vmatpush1.msra.mxu0 0.0
    %552 = vmatprep.subr.mxu0 0.0
    %553 = vmatpush1.msra.mxu0 0.0
    %554 = vmatprep.subr.mxu0 0.0
    %555 = vmatpush1.msra.mxu0 0.0
    %556 = vmatprep.subr.mxu0 0.0
    %557 = vmatpush1.msra.mxu0 0.0
    %558 = vmatprep.subr.mxu0 0.0
    %559 = vmatpush1.msra.mxu0 0.0
    %560 = vmatprep.subr.mxu0 0.0
    %561 = vmatpush1.msra.mxu0 0.0
    %562 = vmatprep.subr.mxu0 0.0
    %563 = vmatpush1.msra.mxu0 0.0
    %564 = vmatprep.subr.mxu0 0.0
    %565 = vmatpush1.msra.mxu0 0.0
    %566 = vmatprep.subr.mxu0 0.0
    %567 = vmatpush1.msra.mxu0 0.0
    %568 = vmatprep.subr.mxu0 0.0
    %569 = vmatpush1.msra.mxu0 0.0
    %570 = vmatprep.subr.mxu0 0.0
    %571 = vmatpush1.msra.mxu0 0.0
    %572 = vmatprep.subr.mxu0 0.0
    %573 = vmatpush1.msra.mxu0 0.0
    %574 = vmatprep.subr.mxu0 0.0
    %575 = vmatpush1.msra.mxu0 0.0
    %576 = vmatprep.subr.mxu0 0.0
    %577 = vmatpush1.msra.mxu0 0.0
    %578 = vmatprep.subr.mxu0 0.0
    %579 = vmatpush1.msra.mxu0 0.0
    %580 = vmatprep.subr.mxu0 0.0
    %581 = vmatpush1.msra.mxu0 0.0
    %582 = vmatprep.subr.mxu0 0.0
    %583 = vmatpush1.msra.mxu0 0.0
    %584 = vmatprep.subr.mxu0 0.0
    %585 = vmatpush1.msra.mxu0 0.0
    %586 = vmatprep.subr.mxu0 0.0
    %587 = vmatpush1.msra.mxu0 0.0
    %588 = vmatprep.subr.mxu0 0.0
    %589 = vmatpush1.msra.mxu0 0.0
    %590 = vmatprep.subr.mxu0 0.0
    %591 = vmatpush1.msra.mxu0 0.0
    %592 = vmatprep.subr.mxu0 0.0
    %593 = vmatpush1.msra.mxu0 0.0
    %594 = vmatprep.subr.mxu0 0.0
    %595 = vmatpush1.msra.mxu0 0.0
    %596 = vmatprep.subr.mxu0 0.0
    %597 = vmatpush1.msra.mxu0 0.0
    %598 = vmatprep.subr.mxu0 0.0
    %599 = vmatpush1.msra.mxu0 0.0
    %600 = vmatprep.mubr.f32.mxu0 0.0
    %601 = vmatmul.mubr.f32.gmra.mrb[0].mxu0 %v153
    %v602 = vpop.f32.mrb[0].mxu0
    %v603 = vadd.f32 %v150, %v602
    %v604 = vpop.f32.mrb[0].mxu0
    %605 = vmatprep.mubr.f32.mxu0 0.0
    %606 = vmatmul.mubr.f32.gmra.mrb[0].mxu0 %v156
    %v607 = vpop.f32.mrb[0].mxu0
    %v608 = vadd.f32 %v150, %v607
    %v609 = vpop.f32.mrb[0].mxu0
    %610 = vmatprep.mubr.f32.mxu0 0.0
    %611 = vmatmul.mubr.f32.gmra.mrb[0].mxu0 %v159
    %v612 = vpop.f32.mrb[0].mxu0
    %v613 = vadd.f32 %v150, %v612
    %v614 = vpop.f32.mrb[0].mxu0
    %615 = vmatprep.mubr.f32.mxu0 0.0
    %616 = vmatmul.mubr.f32.gmra.mrb[0].mxu0 %v162
    %v617 = vpop.f32.mrb[0].mxu0
    %v618 = vadd.f32 %v150, %v617
    %v619 = vpop.f32.mrb[0].mxu0
    %620 = vmatprep.mubr.f32.mxu0 0.0
    %621 = vmatmul.mubr.f32.gmra.mrb[0].mxu0 %v165
    %v622 = vpop.f32.mrb[0].mxu0
    %v623 = vadd.f32 %v150, %v622
    %v624 = vpop.f32.mrb[0].mxu0
    %625 = vmatprep.mubr.f32.mxu0 0.0
    %626 = vmatmul.mubr.f32.gmra.mrb[0].mxu0 %v168
    %v627 = vpop.f32.mrb[0].mxu0
    %v628 = vadd.f32 %v150, %v627
    %v629 = vpop.f32.mrb[0].mxu0
    %630 = vmatprep.mubr.f32.mxu0 0.0
    %631 = vmatmul.mubr.f32.gmra.mrb[0].mxu0 %v171
    %v632 = vpop.f32.mrb[0].mxu0
    %v633 = vadd.f32 %v150, %v632
    %v634 = vpop.f32.mrb[0].mxu0
    %635 = vmatprep.mubr.f32.mxu0 0.0
    %636 = vmatmul.mubr.f32.gmra.mrb[0].mxu0 %v174
    %v637 = vpop.f32.mrb[0].mxu0
    %v638 = vadd.f32 %v150, %v637
    %v639 = vpop.f32.mrb[0].mxu0
    %640 = vmatprep.mubr.f32.mxu0 0.0
    %641 = vmatmul.mubr.f32.gmra.mrb[0].mxu0 %v177
    %v642 = vpop.f32.mrb[0].mxu0
    %v643 = vadd.f32 %v150, %v642
    %v644 = vpop.f32.mrb[0].mxu0
    %645 = vmatprep.mubr.f32.mxu0 0.0
    %646 = vmatmul.mubr.f32.gmra.mrb[0].mxu0 %v180
    %v647 = vpop.f32.mrb[0].mxu0
    %v648 = vadd.f32 %v150, %v647
    %v649 = vpop.f32.mrb[0].mxu0
    %650 = vmatprep.mubr.f32.mxu0 0.0
    %651 = vmatmul.mubr.f32.gmra.mrb[0].mxu0 %v183
    %v652 = vpop.f32.mrb[0].mxu0
    %v653 = vadd.f32 %v150, %v652
    %v654 = vpop.f32.mrb[0].mxu0
    %655 = vmatprep.mubr.f32.mxu0 0.0
    %656 = vmatmul.mubr.f32.gmra.mrb[0].mxu0 %v186
    %v657 = vpop.f32.mrb[0].mxu0
    %v658 = vadd.f32 %v150, %v657
    %v659 = vpop.f32.mrb[0].mxu0
    %660 = vmatprep.mubr.f32.mxu0 0.0
    %661 = vmatmul.mubr.f32.gmra.mrb[0].mxu0 %v189
    %v662 = vpop.f32.mrb[0].mxu0
    %v663 = vadd.f32 %v150, %v662
    %v664 = vpop.f32.mrb[0].mxu0
    %665 = vmatprep.mubr.f32.mxu0 0.0
    %666 = vmatmul.mubr.f32.gmra.mrb[0].mxu0 %v192
    %v667 = vpop.f32.mrb[0].mxu0
    %v668 = vadd.f32 %v150, %v667
    %v669 = vpop.f32.mrb[0].mxu0
    %670 = vmatprep.mubr.f32.mxu0 0.0
    %671 = vmatmul.mubr.f32.gmra.mrb[0].mxu0 %v195
    %v672 = vpop.f32.mrb[0].mxu0
    %v673 = vadd.f32 %v150, %v672
    %v674 = vpop.f32.mrb[0].mxu0
    %675 = vmatprep.mubr.f32.mxu0 0.0
    %676 = vmatmul.mubr.f32.gmra.mrb[0].mxu0 %v198
    %v677 = vpop.f32.mrb[0].mxu0
    %v678 = vadd.f32 %v150, %v677
    %v679 = vpop.f32.mrb[0].mxu0
    %680 = vmatprep.mubr.f32.mxu0 0.0
    %681 = vmatmul.mubr.f32.gmra.mrb[0].mxu0 %v201
    %v682 = vpop.f32.mrb[0].mxu0
    %v683 = vadd.f32 %v150, %v682
    %v684 = vpop.f32.mrb[0].mxu0
    %685 = vmatprep.mubr.f32.mxu0 0.0
    %686 = vmatmul.mubr.f32.gmra.mrb[0].mxu0 %v204
    %v687 = vpop.f32.mrb[0].mxu0
    %v688 = vadd.f32 %v150, %v687
    %v689 = vpop.f32.mrb[0].mxu0
    %690 = vmatprep.mubr.f32.mxu0 0.0
    %691 = vmatmul.mubr.f32.gmra.mrb[0].mxu0 %v207
    %v692 = vpop.f32.mrb[0].mxu0
    %v693 = vadd.f32 %v150, %v692
    %v694 = vpop.f32.mrb[0].mxu0
    %695 = vmatprep.mubr.f32.mxu0 0.0
    %696 = vmatmul.mubr.f32.gmra.mrb[0].mxu0 %v210
    %v697 = vpop.f32.mrb[0].mxu0
    %v698 = vadd.f32 %v150, %v697
    %v699 = vpop.f32.mrb[0].mxu0
    %700 = vmatprep.mubr.f32.mxu0 0.0
    %701 = vmatmul.mubr.f32.gmra.mrb[0].mxu0 %v213
    %v702 = vpop.f32.mrb[0].mxu0
    %v703 = vadd.f32 %v150, %v702
    %v704 = vpop.f32.mrb[0].mxu0
    %705 = vmatprep.mubr.f32.mxu0 0.0
    %706 = vmatmul.mubr.f32.gmra.mrb[0].mxu0 %v216
    %v707 = vpop.f32.mrb[0].mxu0
    %v708 = vadd.f32 %v150, %v707
    %v709 = vpop.f32.mrb[0].mxu0
    %710 = vmatprep.mubr.f32.mxu0 0.0
    %711 = vmatmul.mubr.f32.gmra.mrb[0].mxu0 %v219
    %v712 = vpop.f32.mrb[0].mxu0
    %v713 = vadd.f32 %v150, %v712
    %v714 = vpop.f32.mrb[0].mxu0
    %715 = vmatprep.mubr.f32.mxu0 0.0
    %716 = vmatmul.mubr.f32.gmra.mrb[0].mxu0 %v222
    %v717 = vpop.f32.mrb[0].mxu0
    %v718 = vadd.f32 %v150, %v717
    %v719 = vpop.f32.mrb[0].mxu0
    %720 = vmatprep.mubr.f32.mxu0 0.0
    %721 = vmatmul.mubr.f32.gmra.mrb[0].mxu0 %v225
    %v722 = vpop.f32.mrb[0].mxu0
    %v723 = vadd.f32 %v150, %v722
    %v724 = vpop.f32.mrb[0].mxu0
    %725 = vmatprep.mubr.f32.mxu0 0.0
    %726 = vmatmul.mubr.f32.gmra.mrb[0].mxu0 %v228
    %v727 = vpop.f32.mrb[0].mxu0
    %v728 = vadd.f32 %v150, %v727
    %v729 = vpop.f32.mrb[0].mxu0
    %730 = vmatprep.mubr.f32.mxu0 0.0
    %731 = vmatmul.mubr.f32.gmra.mrb[0].mxu0 %v231
    %v732 = vpop.f32.mrb[0].mxu0
    %v733 = vadd.f32 %v150, %v732
    %v734 = vpop.f32.mrb[0].mxu0
    %735 = vmatprep.mubr.f32.mxu0 0.0
    %736 = vmatmul.mubr.f32.gmra.mrb[0].mxu0 %v234
    %v737 = vpop.f32.mrb[0].mxu0
    %v738 = vadd.f32 %v150, %v737
    %v739 = vpop.f32.mrb[0].mxu0
    %740 = vmatprep.mubr.f32.mxu0 0.0
    %741 = vmatmul.mubr.f32.gmra.mrb[0].mxu0 %v237
    %v742 = vpop.f32.mrb[0].mxu0
    %v743 = vadd.f32 %v150, %v742
    %v744 = vpop.f32.mrb[0].mxu0
    %745 = vmatprep.mubr.f32.mxu0 0.0
    %746 = vmatmul.mubr.f32.gmra.mrb[0].mxu0 %v240
    %v747 = vpop.f32.mrb[0].mxu0
    %v748 = vadd.f32 %v150, %v747
    %v749 = vpop.f32.mrb[0].mxu0
    %750 = vmatprep.mubr.f32.mxu0 0.0
    %751 = vmatmul.mubr.f32.gmra.mrb[0].mxu0 %v243
    %v752 = vpop.f32.mrb[0].mxu0
    %v753 = vadd.f32 %v150, %v752
    %v754 = vpop.f32.mrb[0].mxu0
    %755 = vmatprep.mubr.f32.mxu0 0.0
    %756 = vmatmul.mubr.f32.gmra.mrb[0].mxu0 %v246
    %v757 = vpop.f32.mrb[0].mxu0
    %v758 = vadd.f32 %v150, %v757
    %v759 = vpop.f32.mrb[0].mxu0
    %760 = vmatprep.mubr.f32.mxu0 0.0
    %761 = vmatmul.mubr.f32.gmra.mrb[0].mxu0 %v249
    %v762 = vpop.f32.mrb[0].mxu0
    %v763 = vadd.f32 %v150, %v762
    %v764 = vpop.f32.mrb[0].mxu0
    %765 = vmatprep.mubr.f32.mxu0 0.0
    %766 = vmatmul.mubr.f32.gmra.mrb[0].mxu0 %v252
    %v767 = vpop.f32.mrb[0].mxu0
    %v768 = vadd.f32 %v150, %v767
    %v769 = vpop.f32.mrb[0].mxu0
    %770 = vmatprep.mubr.f32.mxu0 0.0
    %771 = vmatmul.mubr.f32.gmra.mrb[0].mxu0 %v255
    %v772 = vpop.f32.mrb[0].mxu0
    %v773 = vadd.f32 %v150, %v772
    %v774 = vpop.f32.mrb[0].mxu0
    %775 = vmatprep.mubr.f32.mxu0 0.0
    %776 = vmatmul.mubr.f32.gmra.mrb[0].mxu0 %v258
    %v777 = vpop.f32.mrb[0].mxu0
    %v778 = vadd.f32 %v150, %v777
    %v779 = vpop.f32.mrb[0].mxu0
    %780 = vmatprep.mubr.f32.mxu0 0.0
    %781 = vmatmul.mubr.f32.gmra.mrb[0].mxu0 %v261
    %v782 = vpop.f32.mrb[0].mxu0
    %v783 = vadd.f32 %v150, %v782
    %v784 = vpop.f32.mrb[0].mxu0
    %785 = vmatprep.mubr.f32.mxu0 0.0
    %786 = vmatmul.mubr.f32.gmra.mrb[0].mxu0 %v264
    %v787 = vpop.f32.mrb[0].mxu0
    %v788 = vadd.f32 %v150, %v787
    %v789 = vpop.f32.mrb[0].mxu0
    %790 = vmatprep.mubr.f32.mxu0 0.0
    %791 = vmatmul.mubr.f32.gmra.mrb[0].mxu0 %v267
    %v792 = vpop.f32.mrb[0].mxu0
    %v793 = vadd.f32 %v150, %v792
    %v794 = vpop.f32.mrb[0].mxu0
    %795 = vmatprep.mubr.f32.mxu0 0.0
    %796 = vmatmul.mubr.f32.gmra.mrb[0].mxu0 %v270
    %v797 = vpop.f32.mrb[0].mxu0
    %v798 = vadd.f32 %v150, %v797
    %v799 = vpop.f32.mrb[0].mxu0
    %800 = vmatprep.mubr.f32.mxu0 0.0
    %801 = vmatmul.mubr.f32.gmra.mrb[0].mxu0 %v273
    %v802 = vpop.f32.mrb[0].mxu0
    %v803 = vadd.f32 %v150, %v802
    %v804 = vpop.f32.mrb[0].mxu0
    %805 = vmatprep.mubr.f32.mxu0 0.0
    %806 = vmatmul.mubr.f32.gmra.mrb[0].mxu0 %v276
    %v807 = vpop.f32.mrb[0].mxu0
    %v808 = vadd.f32 %v150, %v807
    %v809 = vpop.f32.mrb[0].mxu0
    %810 = vmatprep.mubr.f32.mxu0 0.0
    %811 = vmatmul.mubr.f32.gmra.mrb[0].mxu0 %v279
    %v812 = vpop.f32.mrb[0].mxu0
    %v813 = vadd.f32 %v150, %v812
    %v814 = vpop.f32.mrb[0].mxu0
    %815 = vmatprep.mubr.f32.mxu0 0.0
    %816 = vmatmul.mubr.f32.gmra.mrb[0].mxu0 %v282
    %v817 = vpop.f32.mrb[0].mxu0
    %v818 = vadd.f32 %v150, %v817
    %v819 = vpop.f32.mrb[0].mxu0
    %820 = vmatprep.mubr.f32.mxu0 0.0
    %821 = vmatmul.mubr.f32.gmra.mrb[0].mxu0 %v285
    %v822 = vpop.f32.mrb[0].mxu0
    %v823 = vadd.f32 %v150, %v822
    %v824 = vpop.f32.mrb[0].mxu0
    %825 = vmatprep.mubr.f32.mxu0 0.0
    %826 = vmatmul.mubr.f32.gmra.mrb[0].mxu0 %v288
    %v827 = vpop.f32.mrb[0].mxu0
    %v828 = vadd.f32 %v150, %v827
    %v829 = vpop.f32.mrb[0].mxu0
    %830 = vmatprep.mubr.f32.mxu0 0.0
    %831 = vmatmul.mubr.f32.gmra.mrb[0].mxu0 %v291
    %v832 = vpop.f32.mrb[0].mxu0
    %v833 = vadd.f32 %v150, %v832
    %v834 = vpop.f32.mrb[0].mxu0
    %835 = vmatprep.mubr.f32.mxu0 0.0
    %836 = vmatmul.mubr.f32.gmra.mrb[0].mxu0 %v294
    %v837 = vpop.f32.mrb[0].mxu0
    %v838 = vadd.f32 %v150, %v837
    %v839 = vpop.f32.mrb[0].mxu0
    %840 = vmatprep.mubr.f32.mxu0 0.0
    %841 = vmatmul.mubr.f32.gmra.mrb[0].mxu0 %v297
    %v842 = vpop.f32.mrb[0].mxu0
    %v843 = vadd.f32 %v150, %v842
    %v844 = vpop.f32.mrb[0].mxu0
    %845 = vmatprep.mubr.f32.mxu0 0.0
    %846 = vmatmul.mubr.f32.gmra.mrb[0].mxu0 %v300
    %v847 = vpop.f32.mrb[0].mxu0
    %v848 = vadd.f32 %v150, %v847
    %v849 = vpop.f32.mrb[0].mxu0
    %850 = vmatprep.mubr.f32.mxu0 0.0
    %851 = vmatmul.mubr.f32.gmra.mrb[0].mxu0 %v303
    %v852 = vpop.f32.mrb[0].mxu0
    %v853 = vadd.f32 %v150, %v852
    %v854 = vpop.f32.mrb[0].mxu0
    %855 = vmatprep.mubr.f32.mxu0 0.0
    %856 = vmatmul.mubr.f32.gmra.mrb[0].mxu0 %v306
    %v857 = vpop.f32.mrb[0].mxu0
    %v858 = vadd.f32 %v150, %v857
    %v859 = vpop.f32.mrb[0].mxu0
    %860 = vmatprep.mubr.f32.mxu0 0.0
    %861 = vmatmul.mubr.f32.gmra.mrb[0].mxu0 %v309
    %v862 = vpop.f32.mrb[0].mxu0
    %v863 = vadd.f32 %v150, %v862
    %v864 = vpop.f32.mrb[0].mxu0
    %865 = vmatprep.mubr.f32.mxu0 0.0
    %866 = vmatmul.mubr.f32.gmra.mrb[0].mxu0 %v312
    %v867 = vpop.f32.mrb[0].mxu0
    %v868 = vadd.f32 %v150, %v867
    %v869 = vpop.f32.mrb[0].mxu0
    %870 = vmatprep.mubr.f32.mxu0 0.0
    %871 = vmatmul.mubr.f32.gmra.mrb[0].mxu0 %v315
    %v872 = vpop.f32.mrb[0].mxu0
    %v873 = vadd.f32 %v150, %v872
    %v874 = vpop.f32.mrb[0].mxu0
    %875 = vmatprep.mubr.f32.mxu0 0.0
    %876 = vmatmul.mubr.f32.gmra.mrb[0].mxu0 %v318
    %v877 = vpop.f32.mrb[0].mxu0
    %v878 = vadd.f32 %v150, %v877
    %v879 = vpop.f32.mrb[0].mxu0
    %880 = vmatprep.mubr.f32.mxu0 0.0
    %881 = vmatmul.mubr.f32.gmra.mrb[0].mxu0 %v321
    %v882 = vpop.f32.mrb[0].mxu0
    %v883 = vadd.f32 %v150, %v882
    %v884 = vpop.f32.mrb[0].mxu0
    %885 = vmatprep.mubr.f32.mxu0 0.0
    %886 = vmatmul.mubr.f32.gmra.mrb[0].mxu0 %v324
    %v887 = vpop.f32.mrb[0].mxu0
    %v888 = vadd.f32 %v150, %v887
    %v889 = vpop.f32.mrb[0].mxu0
    %890 = vmatprep.mubr.f32.mxu0 0.0
    %891 = vmatmul.mubr.f32.gmra.mrb[0].mxu0 %v327
    %v892 = vpop.f32.mrb[0].mxu0
    %v893 = vadd.f32 %v150, %v892
    %v894 = vpop.f32.mrb[0].mxu0
    %895 = vmatprep.mubr.f32.mxu0 0.0
    %896 = vmatmul.mubr.f32.gmra.mrb[0].mxu0 %v330
    %v897 = vpop.f32.mrb[0].mxu0
    %v898 = vadd.f32 %v150, %v897
    %v899 = vpop.f32.mrb[0].mxu0
    %900 = vmatprep.mubr.f32.mxu0 0.0
    %901 = vmatmul.mubr.f32.gmra.mrb[0].mxu0 %v333
    %v902 = vpop.f32.mrb[0].mxu0
    %v903 = vadd.f32 %v150, %v902
    %v904 = vpop.f32.mrb[0].mxu0
    %905 = vmatprep.mubr.f32.mxu0 0.0
    %906 = vmatmul.mubr.f32.gmra.mrb[0].mxu0 %v336
    %v907 = vpop.f32.mrb[0].mxu0
    %v908 = vadd.f32 %v150, %v907
    %v909 = vpop.f32.mrb[0].mxu0
    %910 = vmatprep.mubr.f32.mxu0 0.0
    %911 = vmatmul.mubr.f32.gmra.mrb[0].mxu0 %v339
    %v912 = vpop.f32.mrb[0].mxu0
    %v913 = vadd.f32 %v150, %v912
    %v914 = vpop.f32.mrb[0].mxu0
    %915 = vmatprep.mubr.f32.mxu0 0.0
    %916 = vmatmul.mubr.f32.gmra.mrb[0].mxu0 %v342
    %v917 = vpop.f32.mrb[0].mxu0
    %v918 = vadd.f32 %v150, %v917
    %v919 = vpop.f32.mrb[0].mxu0
    %920 = vmatprep.mubr.f32.mxu0 0.0
    %921 = vmatmul.mubr.f32.gmra.mrb[0].mxu0 %v345
    %v922 = vpop.f32.mrb[0].mxu0
    %v923 = vadd.f32 %v150, %v922
    %v924 = vpop.f32.mrb[0].mxu0
    %925 = vmatprep.mubr.f32.mxu0 0.0
    %926 = vmatmul.mubr.f32.gmra.mrb[0].mxu0 %v348
    %v927 = vpop.f32.mrb[0].mxu0
    %v928 = vadd.f32 %v150, %v927
    %v929 = vpop.f32.mrb[0].mxu0
    %930 = vmatprep.mubr.f32.mxu0 0.0
    %931 = vmatmul.mubr.f32.gmra.mrb[0].mxu0 %v351
    %v932 = vpop.f32.mrb[0].mxu0
    %v933 = vadd.f32 %v150, %v932
    %v934 = vpop.f32.mrb[0].mxu0
    %935 = vmatprep.mubr.f32.mxu0 0.0
    %936 = vmatmul.mubr.f32.gmra.mrb[0].mxu0 %v354
    %v937 = vpop.f32.mrb[0].mxu0
    %v938 = vadd.f32 %v150, %v937
    %v939 = vpop.f32.mrb[0].mxu0
    %940 = vmatprep.mubr.f32.mxu0 0.0
    %941 = vmatmul.mubr.f32.gmra.mrb[0].mxu0 %v357
    %v942 = vpop.f32.mrb[0].mxu0
    %v943 = vadd.f32 %v150, %v942
    %v944 = vpop.f32.mrb[0].mxu0
    %945 = vmatprep.mubr.f32.mxu0 0.0
    %946 = vmatmul.mubr.f32.gmra.mrb[0].mxu0 %v360
    %v947 = vpop.f32.mrb[0].mxu0
    %v948 = vadd.f32 %v150, %v947
    %v949 = vpop.f32.mrb[0].mxu0
    %950 = vmatprep.mubr.f32.mxu0 0.0
    %951 = vmatmul.mubr.f32.gmra.mrb[0].mxu0 %v363
    %v952 = vpop.f32.mrb[0].mxu0
    %v953 = vadd.f32 %v150, %v952
    %v954 = vpop.f32.mrb[0].mxu0
    %955 = vmatprep.mubr.f32.mxu0 0.0
    %956 = vmatmul.mubr.f32.gmra.mrb[0].mxu0 %v366
    %v957 = vpop.f32.mrb[0].mxu0
    %v958 = vadd.f32 %v150, %v957
    %v959 = vpop.f32.mrb[0].mxu0
    %960 = vmatprep.mubr.f32.mxu0 0.0
    %961 = vmatmul.mubr.f32.gmra.mrb[0].mxu0 %v369
    %v962 = vpop.f32.mrb[0].mxu0
    %v963 = vadd.f32 %v150, %v962
    %v964 = vpop.f32.mrb[0].mxu0
    %965 = vmatprep.mubr.f32.mxu0 0.0
    %966 = vmatmul.mubr.f32.gmra.mrb[0].mxu0 %v372
    %v967 = vpop.f32.mrb[0].mxu0
    %v968 = vadd.f32 %v150, %v967
    %v969 = vpop.f32.mrb[0].mxu0
    %970 = vmatprep.mubr.f32.mxu0 0.0
    %971 = vmatmul.mubr.f32.gmra.mrb[0].mxu0 %v375
    %v972 = vpop.f32.mrb[0].mxu0
    %v973 = vadd.f32 %v150, %v972
    %v974 = vpop.f32.mrb[0].mxu0
    %975 = vmatprep.mubr.f32.mxu0 0.0
    %976 = vmatmul.mubr.f32.gmra.mrb[0].mxu0 %v378
    %v977 = vpop.f32.mrb[0].mxu0
    %v978 = vadd.f32 %v150, %v977
    %v979 = vpop.f32.mrb[0].mxu0
    %980 = vmatprep.mubr.f32.mxu0 0.0
    %981 = vmatmul.mubr.f32.gmra.mrb[0].mxu0 %v381
    %v982 = vpop.f32.mrb[0].mxu0
    %v983 = vadd.f32 %v150, %v982
    %v984 = vpop.f32.mrb[0].mxu0
    %985 = vmatprep.mubr.f32.mxu0 0.0
    %986 = vmatmul.mubr.f32.gmra.mrb[0].mxu0 %v384
    %v987 = vpop.f32.mrb[0].mxu0
    %v988 = vadd.f32 %v150, %v987
    %v989 = vpop.f32.mrb[0].mxu0
    %990 = vmatprep.mubr.f32.mxu0 0.0
    %991 = vmatmul.mubr.f32.gmra.mrb[0].mxu0 %v387
    %v992 = vpop.f32.mrb[0].mxu0
    %v993 = vadd.f32 %v150, %v992
    %v994 = vpop.f32.mrb[0].mxu0
    %995 = vmatprep.mubr.f32.mxu0 0.0
    %996 = vmatmul.mubr.f32.gmra.mrb[0].mxu0 %v390
    %v997 = vpop.f32.mrb[0].mxu0
    %v998 = vadd.f32 %v150, %v997
    %v999 = vpop.f32.mrb[0].mxu0
    %1000 = vmatprep.mubr.f32.mxu0 0.0
    %1001 = vmatmul.mubr.f32.gmra.mrb[0].mxu0 %v393
    %v1002 = vpop.f32.mrb[0].mxu0
    %v1003 = vadd.f32 %v150, %v1002
    %v1004 = vpop.f32.mrb[0].mxu0
    %1005 = vmatprep.mubr.f32.mxu0 0.0
    %1006 = vmatmul.mubr.f32.gmra.mrb[0].mxu0 %v396
    %v1007 = vpop.f32.mrb[0].mxu0
    %v1008 = vadd.f32 %v150, %v1007
    %v1009 = vpop.f32.mrb[0].mxu0
    %1010 = vmatprep.mubr.f32.mxu0 0.0
    %1011 = vmatmul.mubr.f32.gmra.mrb[0].mxu0 %v399
    %v1012 = vpop.f32.mrb[0].mxu0
    %v1013 = vadd.f32 %v150, %v1012
    %v1014 = vpop.f32.mrb[0].mxu0
    %1015 = vmatprep.mubr.f32.mxu0 0.0
    %1016 = vmatmul.mubr.f32.gmra.mrb[0].mxu0 %v402
    %v1017 = vpop.f32.mrb[0].mxu0
    %v1018 = vadd.f32 %v150, %v1017
    %v1019 = vpop.f32.mrb[0].mxu0
    %1020 = vmatprep.mubr.f32.mxu0 0.0
    %1021 = vmatmul.mubr.f32.gmra.mrb[0].mxu0 %v405
    %v1022 = vpop.f32.mrb[0].mxu0
    %v1023 = vadd.f32 %v150, %v1022
    %v1024 = vpop.f32.mrb[0].mxu0
    %1025 = vmatprep.mubr.f32.mxu0 0.0
    %1026 = vmatmul.mubr.f32.gmra.mrb[0].mxu0 %v408
    %v1027 = vpop.f32.mrb[0].mxu0
    %v1028 = vadd.f32 %v150, %v1027
    %v1029 = vpop.f32.mrb[0].mxu0
    %1030 = vmatprep.mubr.f32.mxu0 0.0
    %1031 = vmatmul.mubr.f32.gmra.mrb[0].mxu0 %v411
    %v1032 = vpop.f32.mrb[0].mxu0
    %v1033 = vadd.f32 %v150, %v1032
    %v1034 = vpop.f32.mrb[0].mxu0
    %1035 = vmatprep.mubr.f32.mxu0 0.0
    %1036 = vmatmul.mubr.f32.gmra.mrb[0].mxu0 %v414
    %v1037 = vpop.f32.mrb[0].mxu0
    %v1038 = vadd.f32 %v150, %v1037
    %v1039 = vpop.f32.mrb[0].mxu0
    %1040 = vmatprep.mubr.f32.mxu0 0.0
    %1041 = vmatmul.mubr.f32.gmra.mrb[0].mxu0 %v417
    %v1042 = vpop.f32.mrb[0].mxu0
    %v1043 = vadd.f32 %v150, %v1042
    %v1044 = vpop.f32.mrb[0].mxu0
    %1045 = vmatprep.mubr.f32.mxu0 0.0
    %1046 = vmatmul.mubr.f32.gmra.mrb[0].mxu0 %v420
    %v1047 = vpop.f32.mrb[0].mxu0
    %v1048 = vadd.f32 %v150, %v1047
    %v1049 = vpop.f32.mrb[0].mxu0
    %1050 = vmatprep.mubr.f32.mxu0 0.0
    %1051 = vmatmul.mubr.f32.gmra.mrb[0].mxu0 %v423
    %v1052 = vpop.f32.mrb[0].mxu0
    %v1053 = vadd.f32 %v150, %v1052
    %v1054 = vpop.f32.mrb[0].mxu0
    %1055 = vmatprep.mubr.f32.mxu0 0.0
    %1056 = vmatmul.mubr.f32.gmra.mrb[0].mxu0 %v426
    %v1057 = vpop.f32.mrb[0].mxu0
    %v1058 = vadd.f32 %v150, %v1057
    %v1059 = vpop.f32.mrb[0].mxu0
    %1060 = vmatprep.mubr.f32.mxu0 0.0
    %1061 = vmatmul.mubr.f32.gmra.mrb[0].mxu0 %v429
    %v1062 = vpop.f32.mrb[0].mxu0
    %v1063 = vadd.f32 %v150, %v1062
    %v1064 = vpop.f32.mrb[0].mxu0
    %1065 = vmatprep.mubr.f32.mxu0 0.0
    %1066 = vmatmul.mubr.f32.gmra.mrb[0].mxu0 %v432
    %v1067 = vpop.f32.mrb[0].mxu0
    %v1068 = vadd.f32 %v150, %v1067
    %v1069 = vpop.f32.mrb[0].mxu0
    %1070 = vmatprep.mubr.f32.mxu0 0.0
    %1071 = vmatmul.mubr.f32.gmra.mrb[0].mxu0 %v435
    %v1072 = vpop.f32.mrb[0].mxu0
    %v1073 = vadd.f32 %v150, %v1072
    %v1074 = vpop.f32.mrb[0].mxu0
    %1075 = vmatprep.mubr.f32.mxu0 0.0
    %1076 = vmatmul.mubr.f32.gmra.mrb[0].mxu0 %v438
    %v1077 = vpop.f32.mrb[0].mxu0
    %v1078 = vadd.f32 %v150, %v1077
    %v1079 = vpop.f32.mrb[0].mxu0
    %1080 = vmatprep.mubr.f32.mxu0 0.0
    %1081 = vmatmul.mubr.f32.gmra.mrb[0].mxu0 %v441
    %v1082 = vpop.f32.mrb[0].mxu0
    %v1083 = vadd.f32 %v150, %v1082
    %v1084 = vpop.f32.mrb[0].mxu0
    %1085 = vmatprep.mubr.f32.mxu0 0.0
    %1086 = vmatmul.mubr.f32.gmra.mrb[0].mxu0 %v444
    %v1087 = vpop.f32.mrb[0].mxu0
    %v1088 = vadd.f32 %v150, %v1087
    %v1089 = vpop.f32.mrb[0].mxu0
    %1090 = vmatprep.mubr.f32.mxu0 0.0
    %1091 = vmatmul.mubr.f32.gmra.mrb[0].mxu0 %v447
    %v1092 = vpop.f32.mrb[0].mxu0
    %v1093 = vadd.f32 %v150, %v1092
    %v1094 = vpop.f32.mrb[0].mxu0
    %1095 = vmatprep.mubr.f32.mxu0 0.0
    %1096 = vmatmul.mubr.f32.gmra.mrb[0].mxu0 %v450
    %v1097 = vpop.f32.mrb[0].mxu0
    %v1098 = vadd.f32 %v150, %v1097
    %v1099 = vpop.f32.mrb[0].mxu0
    %1100 = vmatprep.mubr.f32.mxu0 0.0
    %1101 = vmatmul.mubr.f32.gmra.mrb[0].mxu0 %v453
    %v1102 = vpop.f32.mrb[0].mxu0
    %v1103 = vadd.f32 %v150, %v1102
    %v1104 = vpop.f32.mrb[0].mxu0
    %1105 = vmatprep.mubr.f32.mxu0 0.0
    %1106 = vmatmul.mubr.f32.gmra.mrb[0].mxu0 %v456
    %v1107 = vpop.f32.mrb[0].mxu0
    %v1108 = vadd.f32 %v150, %v1107
    %v1109 = vpop.f32.mrb[0].mxu0
    %1110 = vmatprep.mubr.f32.mxu0 0.0
    %1111 = vmatmul.mubr.f32.gmra.mrb[0].mxu0 %v459
    %v1112 = vpop.f32.mrb[0].mxu0
    %v1113 = vadd.f32 %v150, %v1112
    %v1114 = vpop.f32.mrb[0].mxu0
    %1115 = vmatprep.mubr.f32.mxu0 0.0
    %1116 = vmatmul.mubr.f32.gmra.mrb[0].mxu0 %v462
    %v1117 = vpop.f32.mrb[0].mxu0
    %v1118 = vadd.f32 %v150, %v1117
    %v1119 = vpop.f32.mrb[0].mxu0
    %1120 = vmatprep.mubr.f32.mxu0 0.0
    %1121 = vmatmul.mubr.f32.gmra.mrb[0].mxu0 %v465
    %v1122 = vpop.f32.mrb[0].mxu0
    %v1123 = vadd.f32 %v150, %v1122
    %v1124 = vpop.f32.mrb[0].mxu0
    %1125 = vmatprep.mubr.f32.mxu0 0.0
    %1126 = vmatmul.mubr.f32.gmra.mrb[0].mxu0 %v468
    %v1127 = vpop.f32.mrb[0].mxu0
    %v1128 = vadd.f32 %v150, %v1127
    %v1129 = vpop.f32.mrb[0].mxu0
    %1130 = vmatprep.mubr.f32.mxu0 0.0
    %1131 = vmatmul.mubr.f32.gmra.mrb[0].mxu0 %v471
    %v1132 = vpop.f32.mrb[0].mxu0
    %v1133 = vadd.f32 %v150, %v1132
    %v1134 = vpop.f32.mrb[0].mxu0
    %1135 = vmatprep.mubr.f32.mxu0 0.0
    %1136 = vmatmul.mubr.f32.gmra.mrb[0].mxu0 %v474
    %v1137 = vpop.f32.mrb[0].mxu0
    %v1138 = vadd.f32 %v150, %v1137
    %v1139 = vpop.f32.mrb[0].mxu0
    %1140 = vmatprep.mubr.f32.mxu0 0.0
    %1141 = vmatmul.mubr.f32.gmra.mrb[0].mxu0 %v477
    %v1142 = vpop.f32.mrb[0].mxu0
    %v1143 = vadd.f32 %v150, %v1142
    %v1144 = vpop.f32.mrb[0].mxu0
    %1145 = vmatprep.mubr.f32.mxu0 0.0
    %1146 = vmatmul.mubr.f32.gmra.mrb[0].mxu0 %v480
    %v1147 = vpop.f32.mrb[0].mxu0
    %v1148 = vadd.f32 %v150, %v1147
    %v1149 = vpop.f32.mrb[0].mxu0
    %1150 = vmatprep.mubr.f32.mxu0 0.0
    %1151 = vmatmul.mubr.f32.gmra.mrb[0].mxu0 %v483
    %v1152 = vpop.f32.mrb[0].mxu0
    %v1153 = vadd.f32 %v150, %v1152
    %v1154 = vpop.f32.mrb[0].mxu0
    %1155 = vmatprep.mubr.f32.mxu0 0.0
    %1156 = vmatmul.mubr.f32.gmra.mrb[0].mxu0 %v486
    %v1157 = vpop.f32.mrb[0].mxu0
    %v1158 = vadd.f32 %v150, %v1157
    %v1159 = vpop.f32.mrb[0].mxu0
    %1160 = vmatprep.mubr.f32.mxu0 0.0
    %1161 = vmatmul.mubr.f32.gmra.mrb[0].mxu0 %v489
    %v1162 = vpop.f32.mrb[0].mxu0
    %v1163 = vadd.f32 %v150, %v1162
    %v1164 = vpop.f32.mrb[0].mxu0
    %1165 = vmatprep.mubr.f32.mxu0 0.0
    %1166 = vmatmul.mubr.f32.gmra.mrb[0].mxu0 %v492
    %v1167 = vpop.f32.mrb[0].mxu0
    %v1168 = vadd.f32 %v150, %v1167
    %v1169 = vpop.f32.mrb[0].mxu0
    %1170 = vmatprep.mubr.f32.mxu0 0.0
    %1171 = vmatmul.mubr.f32.gmra.mrb[0].mxu0 %v495
    %v1172 = vpop.f32.mrb[0].mxu0
    %v1173 = vadd.f32 %v150, %v1172
    %v1174 = vpop.f32.mrb[0].mxu0
    %1175 = vmatprep.mubr.f32.mxu0 0.0
    %1176 = vmatmul.mubr.f32.gmra.mrb[0].mxu0 %v498
    %v1177 = vpop.f32.mrb[0].mxu0
    %v1178 = vadd.f32 %v150, %v1177
    %v1179 = vpop.f32.mrb[0].mxu0
    %1180 = vmatprep.mubr.f32.mxu0 0.0
    %1181 = vmatmul.mubr.f32.gmra.mrb[0].mxu0 %v501
    %v1182 = vpop.f32.mrb[0].mxu0
    %v1183 = vadd.f32 %v150, %v1182
    %v1184 = vpop.f32.mrb[0].mxu0
    %1185 = vmatprep.mubr.f32.mxu0 0.0
    %1186 = vmatmul.mubr.f32.gmra.mrb[0].mxu0 %v504
    %v1187 = vpop.f32.mrb[0].mxu0
    %v1188 = vadd.f32 %v150, %v1187
    %v1189 = vpop.f32.mrb[0].mxu0
    %1190 = vmatprep.mubr.f32.mxu0 0.0
    %1191 = vmatmul.mubr.f32.gmra.mrb[0].mxu0 %v507
    %v1192 = vpop.f32.mrb[0].mxu0
    %v1193 = vadd.f32 %v150, %v1192
    %v1194 = vpop.f32.mrb[0].mxu0
    %1195 = vmatprep.mubr.f32.mxu0 0.0
    %1196 = vmatmul.mubr.f32.gmra.mrb[0].mxu0 %v510
    %v1197 = vpop.f32.mrb[0].mxu0
    %v1198 = vadd.f32 %v150, %v1197
    %v1199 = vpop.f32.mrb[0].mxu0
    %1200 = vmatprep.mubr.f32.mxu0 0.0
    %1201 = vmatmul.mubr.f32.gmra.mrb[0].mxu0 %v513
    %v1202 = vpop.f32.mrb[0].mxu0
    %v1203 = vadd.f32 %v150, %v1202
    %v1204 = vpop.f32.mrb[0].mxu0
    %1205 = vmatprep.mubr.f32.mxu0 0.0
    %1206 = vmatmul.mubr.f32.gmra.mrb[0].mxu0 %v516
    %v1207 = vpop.f32.mrb[0].mxu0
    %v1208 = vadd.f32 %v150, %v1207
    %v1209 = vpop.f32.mrb[0].mxu0
    %1210 = vmatprep.mubr.f32.mxu0 0.0
    %1211 = vmatmul.mubr.f32.gmra.mrb[0].mxu0 %v519
    %v1212 = vpop.f32.mrb[0].mxu0
    %v1213 = vadd.f32 %v150, %v1212
    %v1214 = vpop.f32.mrb[0].mxu0
    %1215 = vmatprep.mubr.f32.mxu0 0.0
    %1216 = vmatmul.mubr.f32.gmra.mrb[0].mxu0 %v522
    %v1217 = vpop.f32.mrb[0].mxu0
    %v1218 = vadd.f32 %v150, %v1217
    %v1219 = vpop.f32.mrb[0].mxu0
    %1220 = vmatprep.mubr.f32.mxu0 0.0
    %1221 = vmatmul.mubr.f32.gmra.mrb[0].mxu0 %v525
    %v1222 = vpop.f32.mrb[0].mxu0
    %v1223 = vadd.f32 %v150, %v1222
    %v1224 = vpop.f32.mrb[0].mxu0
    %1225 = vmatprep.mubr.f32.mxu0 0.0
    %1226 = vmatmul.mubr.f32.gmra.mrb[0].mxu0 %v528
    %v1227 = vpop.f32.mrb[0].mxu0
    %v1228 = vadd.f32 %v150, %v1227
    %v1229 = vpop.f32.mrb[0].mxu0
    %1230 = vmatprep.mubr.f32.mxu0 0.0
    %1231 = vmatmul.mubr.f32.gmra.mrb[0].mxu0 %v531
    %v1232 = vpop.f32.mrb[0].mxu0
    %v1233 = vadd.f32 %v150, %v1232
    %v1234 = vpop.f32.mrb[0].mxu0
    %1235 = vmatprep.mubr.f32.mxu0 0.0
    %1236 = vmatmul.mubr.f32.gmra.mrb[0].mxu0 %v534
    %v1237 = vpop.f32.mrb[0].mxu0
    %v1238 = vadd.f32 %v150, %v1237
    %v1239 = vpop.f32.mrb[0].mxu0
    %1240 = vdwg.mxu0
    %v1241 = vmax.f32 %v603, 0.0
    %v1242 = vmax.f32 %v608, 0.0
    %v1243 = vmax.f32 %v613, 0.0
    %v1244 = vmax.f32 %v618, 0.0
    %v1245 = vmax.f32 %v623, 0.0
    %v1246 = vmax.f32 %v628, 0.0
    %v1247 = vmax.f32 %v633, 0.0
    %v1248 = vmax.f32 %v638, 0.0
    %v1249 = vmax.f32 %v643, 0.0
    %v1250 = vmax.f32 %v648, 0.0
    %v1251 = vmax.f32 %v653, 0.0
    %v1252 = vmax.f32 %v658, 0.0
    %v1253 = vmax.f32 %v663, 0.0
    %v1254 = vmax.f32 %v668, 0.0
    %v1255 = vmax.f32 %v673, 0.0
    %v1256 = vmax.f32 %v678, 0.0
    %v1257 = vmax.f32 %v683, 0.0
    %v1258 = vmax.f32 %v688, 0.0
    %v1259 = vmax.f32 %v693, 0.0
    %v1260 = vmax.f32 %v698, 0.0
    %v1261 = vmax.f32 %v703, 0.0
    %v1262 = vmax.f32 %v708, 0.0
    %v1263 = vmax.f32 %v713, 0.0
    %v1264 = vmax.f32 %v718, 0.0
    %v1265 = vmax.f32 %v723, 0.0
    %v1266 = vmax.f32 %v728, 0.0
    %v1267 = vmax.f32 %v733, 0.0
    %v1268 = vmax.f32 %v738, 0.0
    %v1269 = vmax.f32 %v743, 0.0
    %v1270 = vmax.f32 %v748, 0.0
    %v1271 = vmax.f32 %v753, 0.0
    %v1272 = vmax.f32 %v758, 0.0
    %v1273 = vmax.f32 %v763, 0.0
    %v1274 = vmax.f32 %v768, 0.0
    %v1275 = vmax.f32 %v773, 0.0
    %v1276 = vmax.f32 %v778, 0.0
    %v1277 = vmax.f32 %v783, 0.0
    %v1278 = vmax.f32 %v788, 0.0
    %v1279 = vmax.f32 %v793, 0.0
    %v1280 = vmax.f32 %v798, 0.0
    %v1281 = vmax.f32 %v803, 0.0
    %v1282 = vmax.f32 %v808, 0.0
    %v1283 = vmax.f32 %v813, 0.0
    %v1284 = vmax.f32 %v818, 0.0
    %v1285 = vmax.f32 %v823, 0.0
    %v1286 = vmax.f32 %v828, 0.0
    %v1287 = vmax.f32 %v833, 0.0
    %v1288 = vmax.f32 %v838, 0.0
    %v1289 = vmax.f32 %v843, 0.0
    %v1290 = vmax.f32 %v848, 0.0
    %v1291 = vmax.f32 %v853, 0.0
    %v1292 = vmax.f32 %v858, 0.0
    %v1293 = vmax.f32 %v863, 0.0
    %v1294 = vmax.f32 %v868, 0.0
    %v1295 = vmax.f32 %v873, 0.0
    %v1296 = vmax.f32 %v878, 0.0
    %v1297 = vmax.f32 %v883, 0.0
    %v1298 = vmax.f32 %v888, 0.0
    %v1299 = vmax.f32 %v893, 0.0
    %v1300 = vmax.f32 %v898, 0.0
    %v1301 = vmax.f32 %v903, 0.0
    %v1302 = vmax.f32 %v908, 0.0
    %v1303 = vmax.f32 %v913, 0.0
    %v1304 = vmax.f32 %v918, 0.0
    %v1305 = vmax.f32 %v923, 0.0
    %v1306 = vmax.f32 %v928, 0.0
    %v1307 = vmax.f32 %v933, 0.0
    %v1308 = vmax.f32 %v938, 0.0
    %v1309 = vmax.f32 %v943, 0.0
    %v1310 = vmax.f32 %v948, 0.0
    %v1311 = vmax.f32 %v953, 0.0
    %v1312 = vmax.f32 %v958, 0.0
    %v1313 = vmax.f32 %v963, 0.0
    %v1314 = vmax.f32 %v968, 0.0
    %v1315 = vmax.f32 %v973, 0.0
    %v1316 = vmax.f32 %v978, 0.0
    %v1317 = vmax.f32 %v983, 0.0
    %v1318 = vmax.f32 %v988, 0.0
    %v1319 = vmax.f32 %v993, 0.0
    %v1320 = vmax.f32 %v998, 0.0
    %v1321 = vmax.f32 %v1003, 0.0
    %v1322 = vmax.f32 %v1008, 0.0
    %v1323 = vmax.f32 %v1013, 0.0
    %v1324 = vmax.f32 %v1018, 0.0
    %v1325 = vmax.f32 %v1023, 0.0
    %v1326 = vmax.f32 %v1028, 0.0
    %v1327 = vmax.f32 %v1033, 0.0
    %v1328 = vmax.f32 %v1038, 0.0
    %v1329 = vmax.f32 %v1043, 0.0
    %v1330 = vmax.f32 %v1048, 0.0
    %v1331 = vmax.f32 %v1053, 0.0
    %v1332 = vmax.f32 %v1058, 0.0
    %v1333 = vmax.f32 %v1063, 0.0
    %v1334 = vmax.f32 %v1068, 0.0
    %v1335 = vmax.f32 %v1073, 0.0
    %v1336 = vmax.f32 %v1078, 0.0
    %v1337 = vmax.f32 %v1083, 0.0
    %v1338 = vmax.f32 %v1088, 0.0
    %v1339 = vmax.f32 %v1093, 0.0
    %v1340 = vmax.f32 %v1098, 0.0
    %v1341 = vmax.f32 %v1103, 0.0
    %v1342 = vmax.f32 %v1108, 0.0
    %v1343 = vmax.f32 %v1113, 0.0
    %v1344 = vmax.f32 %v1118, 0.0
    %v1345 = vmax.f32 %v1123, 0.0
    %v1346 = vmax.f32 %v1128, 0.0
    %v1347 = vmax.f32 %v1133, 0.0
    %v1348 = vmax.f32 %v1138, 0.0
    %v1349 = vmax.f32 %v1143, 0.0
    %v1350 = vmax.f32 %v1148, 0.0
    %v1351 = vmax.f32 %v1153, 0.0
    %v1352 = vmax.f32 %v1158, 0.0
    %v1353 = vmax.f32 %v1163, 0.0
    %v1354 = vmax.f32 %v1168, 0.0
    %v1355 = vmax.f32 %v1173, 0.0
    %v1356 = vmax.f32 %v1178, 0.0
    %v1357 = vmax.f32 %v1183, 0.0
    %v1358 = vmax.f32 %v1188, 0.0
    %v1359 = vmax.f32 %v1193, 0.0
    %v1360 = vmax.f32 %v1198, 0.0
    %v1361 = vmax.f32 %v1203, 0.0
    %v1362 = vmax.f32 %v1208, 0.0
    %v1363 = vmax.f32 %v1213, 0.0
    %v1364 = vmax.f32 %v1218, 0.0
    %v1365 = vmax.f32 %v1223, 0.0
    %v1366 = vmax.f32 %v1228, 0.0
    %v1367 = vmax.f32 %v1233, 0.0
    %v1368 = vmax.f32 %v1238, 0.0
    %v1369 = vld [vmem:[%s1 + $0x30] sm:$0xff]
    %v1370 = vld [vmem:[%s1 + $0x38] sm:$0xff]
    %v1371 = vld [vmem:[%s1 + $0x40] sm:$0xff]
    %v1372 = vld [vmem:[%s1 + $0x48] sm:$0xff]
    %v1373 = vld [vmem:[%s1 + $0x50] sm:$0xff]
    %v1374 = vld [vmem:[%s1 + $0x58] sm:$0xff]
    %v1375 = vld [vmem:[%s1 + $0x60] sm:$0xff]
    %v1376 = vld [vmem:[%s1 + $0x68] sm:$0xff]
    %v1377 = vld [vmem:[%s1 + $0x70] sm:$0xff]
    %v1378 = vld [vmem:[%s1 + $0x78] sm:$0xff]
    %v1379 = vld [vmem:[%s1 + $0x80] sm:$0xff]
    %v1380 = vld [vmem:[%s1 + $0x88] sm:$0xff]
    %v1381 = vld [vmem:[%s1 + $0x90] sm:$0xff]
    %v1382 = vld [vmem:[%s1 + $0x98] sm:$0xff]
    %v1383 = vld [vmem:[%s1 + $0xa0] sm:$0xff]
    %v1384 = vld [vmem:[%s1 + $0xa8] sm:$0xff]
    %v1385 = vld [vmem:[%s1 + $0xb8] sm:$0x1]
    %v1386 = vlaneseq
    %v1387 = vshrl.u32 %v1386, 7
    %v1388 = vsub.s32 0, %v1387
    %v1389 = vrot.slane %v1385, %v1388
    %1390 = vmatprep.subr.mxu0 0.0
    %1391 = vmatpush1.msra.mxu0 %v1369
    %1392 = vmatprep.subr.mxu0 0.0
    %1393 = vmatpush1.msra.mxu0 %v1370
    %1394 = vmatprep.subr.mxu0 0.0
    %1395 = vmatpush1.msra.mxu0 %v1371
    %1396 = vmatprep.subr.mxu0 0.0
    %1397 = vmatpush1.msra.mxu0 %v1372
    %1398 = vmatprep.subr.mxu0 0.0
    %1399 = vmatpush1.msra.mxu0 %v1373
    %1400 = vmatprep.subr.mxu0 0.0
    %1401 = vmatpush1.msra.mxu0 %v1374
    %1402 = vmatprep.subr.mxu0 0.0
    %1403 = vmatpush1.msra.mxu0 %v1375
    %1404 = vmatprep.subr.mxu0 0.0
    %1405 = vmatpush1.msra.mxu0 %v1376
    %1406 = vmatprep.subr.mxu0 0.0
    %1407 = vmatpush1.msra.mxu0 %v1377
    %1408 = vmatprep.subr.mxu0 0.0
    %1409 = vmatpush1.msra.mxu0 %v1378
    %1410 = vmatprep.subr.mxu0 0.0
    %1411 = vmatpush1.msra.mxu0 %v1379
    %1412 = vmatprep.subr.mxu0 0.0
    %1413 = vmatpush1.msra.mxu0 %v1380
    %1414 = vmatprep.subr.mxu0 0.0
    %1415 = vmatpush1.msra.mxu0 %v1381
    %1416 = vmatprep.subr.mxu0 0.0
    %1417 = vmatpush1.msra.mxu0 %v1382
    %1418 = vmatprep.subr.mxu0 0.0
    %1419 = vmatpush1.msra.mxu0 %v1383
    %1420 = vmatprep.subr.mxu0 0.0
    %1421 = vmatpush1.msra.mxu0 %v1384
    %1422 = vmatprep.subr.mxu0 0.0
    %1423 = vmatpush1.msra.mxu0 0.0
    %1424 = vmatprep.subr.mxu0 0.0
    %1425 = vmatpush1.msra.mxu0 0.0
    %1426 = vmatprep.subr.mxu0 0.0
    %1427 = vmatpush1.msra.mxu0 0.0
    %1428 = vmatprep.subr.mxu0 0.0
    %1429 = vmatpush1.msra.mxu0 0.0
    %1430 = vmatprep.subr.mxu0 0.0
    %1431 = vmatpush1.msra.mxu0 0.0
    %1432 = vmatprep.subr.mxu0 0.0
    %1433 = vmatpush1.msra.mxu0 0.0
    %1434 = vmatprep.subr.mxu0 0.0
    %1435 = vmatpush1.msra.mxu0 0.0
    %1436 = vmatprep.subr.mxu0 0.0
    %1437 = vmatpush1.msra.mxu0 0.0
    %1438 = vmatprep.subr.mxu0 0.0
    %1439 = vmatpush1.msra.mxu0 0.0
    %1440 = vmatprep.subr.mxu0 0.0
    %1441 = vmatpush1.msra.mxu0 0.0
    %1442 = vmatprep.subr.mxu0 0.0
    %1443 = vmatpush1.msra.mxu0 0.0
    %1444 = vmatprep.subr.mxu0 0.0
    %1445 = vmatpush1.msra.mxu0 0.0
    %1446 = vmatprep.subr.mxu0 0.0
    %1447 = vmatpush1.msra.mxu0 0.0
    %1448 = vmatprep.subr.mxu0 0.0
    %1449 = vmatpush1.msra.mxu0 0.0
    %1450 = vmatprep.subr.mxu0 0.0
    %1451 = vmatpush1.msra.mxu0 0.0
    %1452 = vmatprep.subr.mxu0 0.0
    %1453 = vmatpush1.msra.mxu0 0.0
    %1454 = vmatprep.mubr.f32.mxu0 0.0
    %1455 = vmatmul.mubr.f32.gmra.mrb[0].mxu0 %v1241
    %v1456 = vpop.f32.mrb[0].mxu0
    %v1457 = vadd.f32 %v1389, %v1456
    %v1458 = vpop.f32.mrb[0].mxu0
    %1459 = vmatprep.mubr.f32.mxu0 0.0
    %1460 = vmatmul.mubr.f32.gmra.mrb[0].mxu0 %v1242
    %v1461 = vpop.f32.mrb[0].mxu0
    %v1462 = vadd.f32 %v1389, %v1461
    %v1463 = vpop.f32.mrb[0].mxu0
    %1464 = vmatprep.mubr.f32.mxu0 0.0
    %1465 = vmatmul.mubr.f32.gmra.mrb[0].mxu0 %v1243
    %v1466 = vpop.f32.mrb[0].mxu0
    %v1467 = vadd.f32 %v1389, %v1466
    %v1468 = vpop.f32.mrb[0].mxu0
    %1469 = vmatprep.mubr.f32.mxu0 0.0
    %1470 = vmatmul.mubr.f32.gmra.mrb[0].mxu0 %v1244
    %v1471 = vpop.f32.mrb[0].mxu0
    %v1472 = vadd.f32 %v1389, %v1471
    %v1473 = vpop.f32.mrb[0].mxu0
    %1474 = vmatprep.mubr.f32.mxu0 0.0
    %1475 = vmatmul.mubr.f32.gmra.mrb[0].mxu0 %v1245
    %v1476 = vpop.f32.mrb[0].mxu0
    %v1477 = vadd.f32 %v1389, %v1476
    %v1478 = vpop.f32.mrb[0].mxu0
    %1479 = vmatprep.mubr.f32.mxu0 0.0
    %1480 = vmatmul.mubr.f32.gmra.mrb[0].mxu0 %v1246
    %v1481 = vpop.f32.mrb[0].mxu0
    %v1482 = vadd.f32 %v1389, %v1481
    %v1483 = vpop.f32.mrb[0].mxu0
    %1484 = vmatprep.mubr.f32.mxu0 0.0
    %1485 = vmatmul.mubr.f32.gmra.mrb[0].mxu0 %v1247
    %v1486 = vpop.f32.mrb[0].mxu0
    %v1487 = vadd.f32 %v1389, %v1486
    %v1488 = vpop.f32.mrb[0].mxu0
    %1489 = vmatprep.mubr.f32.mxu0 0.0
    %1490 = vmatmul.mubr.f32.gmra.mrb[0].mxu0 %v1248
    %v1491 = vpop.f32.mrb[0].mxu0
    %v1492 = vadd.f32 %v1389, %v1491
    %v1493 = vpop.f32.mrb[0].mxu0
    %1494 = vmatprep.mubr.f32.mxu0 0.0
    %1495 = vmatmul.mubr.f32.gmra.mrb[0].mxu0 %v1249
    %v1496 = vpop.f32.mrb[0].mxu0
    %v1497 = vadd.f32 %v1389, %v1496
    %v1498 = vpop.f32.mrb[0].mxu0
    %1499 = vmatprep.mubr.f32.mxu0 0.0
    %1500 = vmatmul.mubr.f32.gmra.mrb[0].mxu0 %v1250
    %v1501 = vpop.f32.mrb[0].mxu0
    %v1502 = vadd.f32 %v1389, %v1501
    %v1503 = vpop.f32.mrb[0].mxu0
    %1504 = vmatprep.mubr.f32.mxu0 0.0
    %1505 = vmatmul.mubr.f32.gmra.mrb[0].mxu0 %v1251
    %v1506 = vpop.f32.mrb[0].mxu0
    %v1507 = vadd.f32 %v1389, %v1506
    %v1508 = vpop.f32.mrb[0].mxu0
    %1509 = vmatprep.mubr.f32.mxu0 0.0
    %1510 = vmatmul.mubr.f32.gmra.mrb[0].mxu0 %v1252
    %v1511 = vpop.f32.mrb[0].mxu0
    %v1512 = vadd.f32 %v1389, %v1511
    %v1513 = vpop.f32.mrb[0].mxu0
    %1514 = vmatprep.mubr.f32.mxu0 0.0
    %1515 = vmatmul.mubr.f32.gmra.mrb[0].mxu0 %v1253
    %v1516 = vpop.f32.mrb[0].mxu0
    %v1517 = vadd.f32 %v1389, %v1516
    %v1518 = vpop.f32.mrb[0].mxu0
    %1519 = vmatprep.mubr.f32.mxu0 0.0
    %1520 = vmatmul.mubr.f32.gmra.mrb[0].mxu0 %v1254
    %v1521 = vpop.f32.mrb[0].mxu0
    %v1522 = vadd.f32 %v1389, %v1521
    %v1523 = vpop.f32.mrb[0].mxu0
    %1524 = vmatprep.mubr.f32.mxu0 0.0
    %1525 = vmatmul.mubr.f32.gmra.mrb[0].mxu0 %v1255
    %v1526 = vpop.f32.mrb[0].mxu0
    %v1527 = vadd.f32 %v1389, %v1526
    %v1528 = vpop.f32.mrb[0].mxu0
    %1529 = vmatprep.mubr.f32.mxu0 0.0
    %1530 = vmatmul.mubr.f32.gmra.mrb[0].mxu0 %v1256
    %v1531 = vpop.f32.mrb[0].mxu0
    %v1532 = vadd.f32 %v1389, %v1531
    %v1533 = vpop.f32.mrb[0].mxu0
    %1534 = vmatprep.mubr.f32.mxu0 0.0
    %1535 = vmatmul.mubr.f32.gmra.mrb[0].mxu0 %v1257
    %v1536 = vpop.f32.mrb[0].mxu0
    %v1537 = vadd.f32 %v1389, %v1536
    %v1538 = vpop.f32.mrb[0].mxu0
    %1539 = vmatprep.mubr.f32.mxu0 0.0
    %1540 = vmatmul.mubr.f32.gmra.mrb[0].mxu0 %v1258
    %v1541 = vpop.f32.mrb[0].mxu0
    %v1542 = vadd.f32 %v1389, %v1541
    %v1543 = vpop.f32.mrb[0].mxu0
    %1544 = vmatprep.mubr.f32.mxu0 0.0
    %1545 = vmatmul.mubr.f32.gmra.mrb[0].mxu0 %v1259
    %v1546 = vpop.f32.mrb[0].mxu0
    %v1547 = vadd.f32 %v1389, %v1546
    %v1548 = vpop.f32.mrb[0].mxu0
    %1549 = vmatprep.mubr.f32.mxu0 0.0
    %1550 = vmatmul.mubr.f32.gmra.mrb[0].mxu0 %v1260
    %v1551 = vpop.f32.mrb[0].mxu0
    %v1552 = vadd.f32 %v1389, %v1551
    %v1553 = vpop.f32.mrb[0].mxu0
    %1554 = vmatprep.mubr.f32.mxu0 0.0
    %1555 = vmatmul.mubr.f32.gmra.mrb[0].mxu0 %v1261
    %v1556 = vpop.f32.mrb[0].mxu0
    %v1557 = vadd.f32 %v1389, %v1556
    %v1558 = vpop.f32.mrb[0].mxu0
    %1559 = vmatprep.mubr.f32.mxu0 0.0
    %1560 = vmatmul.mubr.f32.gmra.mrb[0].mxu0 %v1262
    %v1561 = vpop.f32.mrb[0].mxu0
    %v1562 = vadd.f32 %v1389, %v1561
    %v1563 = vpop.f32.mrb[0].mxu0
    %1564 = vmatprep.mubr.f32.mxu0 0.0
    %1565 = vmatmul.mubr.f32.gmra.mrb[0].mxu0 %v1263
    %v1566 = vpop.f32.mrb[0].mxu0
    %v1567 = vadd.f32 %v1389, %v1566
    %v1568 = vpop.f32.mrb[0].mxu0
    %1569 = vmatprep.mubr.f32.mxu0 0.0
    %1570 = vmatmul.mubr.f32.gmra.mrb[0].mxu0 %v1264
    %v1571 = vpop.f32.mrb[0].mxu0
    %v1572 = vadd.f32 %v1389, %v1571
    %v1573 = vpop.f32.mrb[0].mxu0
    %1574 = vmatprep.mubr.f32.mxu0 0.0
    %1575 = vmatmul.mubr.f32.gmra.mrb[0].mxu0 %v1265
    %v1576 = vpop.f32.mrb[0].mxu0
    %v1577 = vadd.f32 %v1389, %v1576
    %v1578 = vpop.f32.mrb[0].mxu0
    %1579 = vmatprep.mubr.f32.mxu0 0.0
    %1580 = vmatmul.mubr.f32.gmra.mrb[0].mxu0 %v1266
    %v1581 = vpop.f32.mrb[0].mxu0
    %v1582 = vadd.f32 %v1389, %v1581
    %v1583 = vpop.f32.mrb[0].mxu0
    %1584 = vmatprep.mubr.f32.mxu0 0.0
    %1585 = vmatmul.mubr.f32.gmra.mrb[0].mxu0 %v1267
    %v1586 = vpop.f32.mrb[0].mxu0
    %v1587 = vadd.f32 %v1389, %v1586
    %v1588 = vpop.f32.mrb[0].mxu0
    %1589 = vmatprep.mubr.f32.mxu0 0.0
    %1590 = vmatmul.mubr.f32.gmra.mrb[0].mxu0 %v1268
    %v1591 = vpop.f32.mrb[0].mxu0
    %v1592 = vadd.f32 %v1389, %v1591
    %v1593 = vpop.f32.mrb[0].mxu0
    %1594 = vmatprep.mubr.f32.mxu0 0.0
    %1595 = vmatmul.mubr.f32.gmra.mrb[0].mxu0 %v1269
    %v1596 = vpop.f32.mrb[0].mxu0
    %v1597 = vadd.f32 %v1389, %v1596
    %v1598 = vpop.f32.mrb[0].mxu0
    %1599 = vmatprep.mubr.f32.mxu0 0.0
    %1600 = vmatmul.mubr.f32.gmra.mrb[0].mxu0 %v1270
    %v1601 = vpop.f32.mrb[0].mxu0
    %v1602 = vadd.f32 %v1389, %v1601
    %v1603 = vpop.f32.mrb[0].mxu0
    %1604 = vmatprep.mubr.f32.mxu0 0.0
    %1605 = vmatmul.mubr.f32.gmra.mrb[0].mxu0 %v1271
    %v1606 = vpop.f32.mrb[0].mxu0
    %v1607 = vadd.f32 %v1389, %v1606
    %v1608 = vpop.f32.mrb[0].mxu0
    %1609 = vmatprep.mubr.f32.mxu0 0.0
    %1610 = vmatmul.mubr.f32.gmra.mrb[0].mxu0 %v1272
    %v1611 = vpop.f32.mrb[0].mxu0
    %v1612 = vadd.f32 %v1389, %v1611
    %v1613 = vpop.f32.mrb[0].mxu0
    %1614 = vmatprep.mubr.f32.mxu0 0.0
    %1615 = vmatmul.mubr.f32.gmra.mrb[0].mxu0 %v1273
    %v1616 = vpop.f32.mrb[0].mxu0
    %v1617 = vadd.f32 %v1389, %v1616
    %v1618 = vpop.f32.mrb[0].mxu0
    %1619 = vmatprep.mubr.f32.mxu0 0.0
    %1620 = vmatmul.mubr.f32.gmra.mrb[0].mxu0 %v1274
    %v1621 = vpop.f32.mrb[0].mxu0
    %v1622 = vadd.f32 %v1389, %v1621
    %v1623 = vpop.f32.mrb[0].mxu0
    %1624 = vmatprep.mubr.f32.mxu0 0.0
    %1625 = vmatmul.mubr.f32.gmra.mrb[0].mxu0 %v1275
    %v1626 = vpop.f32.mrb[0].mxu0
    %v1627 = vadd.f32 %v1389, %v1626
    %v1628 = vpop.f32.mrb[0].mxu0
    %1629 = vmatprep.mubr.f32.mxu0 0.0
    %1630 = vmatmul.mubr.f32.gmra.mrb[0].mxu0 %v1276
    %v1631 = vpop.f32.mrb[0].mxu0
    %v1632 = vadd.f32 %v1389, %v1631
    %v1633 = vpop.f32.mrb[0].mxu0
    %1634 = vmatprep.mubr.f32.mxu0 0.0
    %1635 = vmatmul.mubr.f32.gmra.mrb[0].mxu0 %v1277
    %v1636 = vpop.f32.mrb[0].mxu0
    %v1637 = vadd.f32 %v1389, %v1636
    %v1638 = vpop.f32.mrb[0].mxu0
    %1639 = vmatprep.mubr.f32.mxu0 0.0
    %1640 = vmatmul.mubr.f32.gmra.mrb[0].mxu0 %v1278
    %v1641 = vpop.f32.mrb[0].mxu0
    %v1642 = vadd.f32 %v1389, %v1641
    %v1643 = vpop.f32.mrb[0].mxu0
    %1644 = vmatprep.mubr.f32.mxu0 0.0
    %1645 = vmatmul.mubr.f32.gmra.mrb[0].mxu0 %v1279
    %v1646 = vpop.f32.mrb[0].mxu0
    %v1647 = vadd.f32 %v1389, %v1646
    %v1648 = vpop.f32.mrb[0].mxu0
    %1649 = vmatprep.mubr.f32.mxu0 0.0
    %1650 = vmatmul.mubr.f32.gmra.mrb[0].mxu0 %v1280
    %v1651 = vpop.f32.mrb[0].mxu0
    %v1652 = vadd.f32 %v1389, %v1651
    %v1653 = vpop.f32.mrb[0].mxu0
    %1654 = vmatprep.mubr.f32.mxu0 0.0
    %1655 = vmatmul.mubr.f32.gmra.mrb[0].mxu0 %v1281
    %v1656 = vpop.f32.mrb[0].mxu0
    %v1657 = vadd.f32 %v1389, %v1656
    %v1658 = vpop.f32.mrb[0].mxu0
    %1659 = vmatprep.mubr.f32.mxu0 0.0
    %1660 = vmatmul.mubr.f32.gmra.mrb[0].mxu0 %v1282
    %v1661 = vpop.f32.mrb[0].mxu0
    %v1662 = vadd.f32 %v1389, %v1661
    %v1663 = vpop.f32.mrb[0].mxu0
    %1664 = vmatprep.mubr.f32.mxu0 0.0
    %1665 = vmatmul.mubr.f32.gmra.mrb[0].mxu0 %v1283
    %v1666 = vpop.f32.mrb[0].mxu0
    %v1667 = vadd.f32 %v1389, %v1666
    %v1668 = vpop.f32.mrb[0].mxu0
    %1669 = vmatprep.mubr.f32.mxu0 0.0
    %1670 = vmatmul.mubr.f32.gmra.mrb[0].mxu0 %v1284
    %v1671 = vpop.f32.mrb[0].mxu0
    %v1672 = vadd.f32 %v1389, %v1671
    %v1673 = vpop.f32.mrb[0].mxu0
    %1674 = vmatprep.mubr.f32.mxu0 0.0
    %1675 = vmatmul.mubr.f32.gmra.mrb[0].mxu0 %v1285
    %v1676 = vpop.f32.mrb[0].mxu0
    %v1677 = vadd.f32 %v1389, %v1676
    %v1678 = vpop.f32.mrb[0].mxu0
    %1679 = vmatprep.mubr.f32.mxu0 0.0
    %1680 = vmatmul.mubr.f32.gmra.mrb[0].mxu0 %v1286
    %v1681 = vpop.f32.mrb[0].mxu0
    %v1682 = vadd.f32 %v1389, %v1681
    %v1683 = vpop.f32.mrb[0].mxu0
    %1684 = vmatprep.mubr.f32.mxu0 0.0
    %1685 = vmatmul.mubr.f32.gmra.mrb[0].mxu0 %v1287
    %v1686 = vpop.f32.mrb[0].mxu0
    %v1687 = vadd.f32 %v1389, %v1686
    %v1688 = vpop.f32.mrb[0].mxu0
    %1689 = vmatprep.mubr.f32.mxu0 0.0
    %1690 = vmatmul.mubr.f32.gmra.mrb[0].mxu0 %v1288
    %v1691 = vpop.f32.mrb[0].mxu0
    %v1692 = vadd.f32 %v1389, %v1691
    %v1693 = vpop.f32.mrb[0].mxu0
    %1694 = vmatprep.mubr.f32.mxu0 0.0
    %1695 = vmatmul.mubr.f32.gmra.mrb[0].mxu0 %v1289
    %v1696 = vpop.f32.mrb[0].mxu0
    %v1697 = vadd.f32 %v1389, %v1696
    %v1698 = vpop.f32.mrb[0].mxu0
    %1699 = vmatprep.mubr.f32.mxu0 0.0
    %1700 = vmatmul.mubr.f32.gmra.mrb[0].mxu0 %v1290
    %v1701 = vpop.f32.mrb[0].mxu0
    %v1702 = vadd.f32 %v1389, %v1701
    %v1703 = vpop.f32.mrb[0].mxu0
    %1704 = vmatprep.mubr.f32.mxu0 0.0
    %1705 = vmatmul.mubr.f32.gmra.mrb[0].mxu0 %v1291
    %v1706 = vpop.f32.mrb[0].mxu0
    %v1707 = vadd.f32 %v1389, %v1706
    %v1708 = vpop.f32.mrb[0].mxu0
    %1709 = vmatprep.mubr.f32.mxu0 0.0
    %1710 = vmatmul.mubr.f32.gmra.mrb[0].mxu0 %v1292
    %v1711 = vpop.f32.mrb[0].mxu0
    %v1712 = vadd.f32 %v1389, %v1711
    %v1713 = vpop.f32.mrb[0].mxu0
    %1714 = vmatprep.mubr.f32.mxu0 0.0
    %1715 = vmatmul.mubr.f32.gmra.mrb[0].mxu0 %v1293
    %v1716 = vpop.f32.mrb[0].mxu0
    %v1717 = vadd.f32 %v1389, %v1716
    %v1718 = vpop.f32.mrb[0].mxu0
    %1719 = vmatprep.mubr.f32.mxu0 0.0
    %1720 = vmatmul.mubr.f32.gmra.mrb[0].mxu0 %v1294
    %v1721 = vpop.f32.mrb[0].mxu0
    %v1722 = vadd.f32 %v1389, %v1721
    %v1723 = vpop.f32.mrb[0].mxu0
    %1724 = vmatprep.mubr.f32.mxu0 0.0
    %1725 = vmatmul.mubr.f32.gmra.mrb[0].mxu0 %v1295
    %v1726 = vpop.f32.mrb[0].mxu0
    %v1727 = vadd.f32 %v1389, %v1726
    %v1728 = vpop.f32.mrb[0].mxu0
    %1729 = vmatprep.mubr.f32.mxu0 0.0
    %1730 = vmatmul.mubr.f32.gmra.mrb[0].mxu0 %v1296
    %v1731 = vpop.f32.mrb[0].mxu0
    %v1732 = vadd.f32 %v1389, %v1731
    %v1733 = vpop.f32.mrb[0].mxu0
    %1734 = vmatprep.mubr.f32.mxu0 0.0
    %1735 = vmatmul.mubr.f32.gmra.mrb[0].mxu0 %v1297
    %v1736 = vpop.f32.mrb[0].mxu0
    %v1737 = vadd.f32 %v1389, %v1736
    %v1738 = vpop.f32.mrb[0].mxu0
    %1739 = vmatprep.mubr.f32.mxu0 0.0
    %1740 = vmatmul.mubr.f32.gmra.mrb[0].mxu0 %v1298
    %v1741 = vpop.f32.mrb[0].mxu0
    %v1742 = vadd.f32 %v1389, %v1741
    %v1743 = vpop.f32.mrb[0].mxu0
    %1744 = vmatprep.mubr.f32.mxu0 0.0
    %1745 = vmatmul.mubr.f32.gmra.mrb[0].mxu0 %v1299
    %v1746 = vpop.f32.mrb[0].mxu0
    %v1747 = vadd.f32 %v1389, %v1746
    %v1748 = vpop.f32.mrb[0].mxu0
    %1749 = vmatprep.mubr.f32.mxu0 0.0
    %1750 = vmatmul.mubr.f32.gmra.mrb[0].mxu0 %v1300
    %v1751 = vpop.f32.mrb[0].mxu0
    %v1752 = vadd.f32 %v1389, %v1751
    %v1753 = vpop.f32.mrb[0].mxu0
    %1754 = vmatprep.mubr.f32.mxu0 0.0
    %1755 = vmatmul.mubr.f32.gmra.mrb[0].mxu0 %v1301
    %v1756 = vpop.f32.mrb[0].mxu0
    %v1757 = vadd.f32 %v1389, %v1756
    %v1758 = vpop.f32.mrb[0].mxu0
    %1759 = vmatprep.mubr.f32.mxu0 0.0
    %1760 = vmatmul.mubr.f32.gmra.mrb[0].mxu0 %v1302
    %v1761 = vpop.f32.mrb[0].mxu0
    %v1762 = vadd.f32 %v1389, %v1761
    %v1763 = vpop.f32.mrb[0].mxu0
    %1764 = vmatprep.mubr.f32.mxu0 0.0
    %1765 = vmatmul.mubr.f32.gmra.mrb[0].mxu0 %v1303
    %v1766 = vpop.f32.mrb[0].mxu0
    %v1767 = vadd.f32 %v1389, %v1766
    %v1768 = vpop.f32.mrb[0].mxu0
    %1769 = vmatprep.mubr.f32.mxu0 0.0
    %1770 = vmatmul.mubr.f32.gmra.mrb[0].mxu0 %v1304
    %v1771 = vpop.f32.mrb[0].mxu0
    %v1772 = vadd.f32 %v1389, %v1771
    %v1773 = vpop.f32.mrb[0].mxu0
    %1774 = vmatprep.mubr.f32.mxu0 0.0
    %1775 = vmatmul.mubr.f32.gmra.mrb[0].mxu0 %v1305
    %v1776 = vpop.f32.mrb[0].mxu0
    %v1777 = vadd.f32 %v1389, %v1776
    %v1778 = vpop.f32.mrb[0].mxu0
    %1779 = vmatprep.mubr.f32.mxu0 0.0
    %1780 = vmatmul.mubr.f32.gmra.mrb[0].mxu0 %v1306
    %v1781 = vpop.f32.mrb[0].mxu0
    %v1782 = vadd.f32 %v1389, %v1781
    %v1783 = vpop.f32.mrb[0].mxu0
    %1784 = vmatprep.mubr.f32.mxu0 0.0
    %1785 = vmatmul.mubr.f32.gmra.mrb[0].mxu0 %v1307
    %v1786 = vpop.f32.mrb[0].mxu0
    %v1787 = vadd.f32 %v1389, %v1786
    %v1788 = vpop.f32.mrb[0].mxu0
    %1789 = vmatprep.mubr.f32.mxu0 0.0
    %1790 = vmatmul.mubr.f32.gmra.mrb[0].mxu0 %v1308
    %v1791 = vpop.f32.mrb[0].mxu0
    %v1792 = vadd.f32 %v1389, %v1791
    %v1793 = vpop.f32.mrb[0].mxu0
    %1794 = vmatprep.mubr.f32.mxu0 0.0
    %1795 = vmatmul.mubr.f32.gmra.mrb[0].mxu0 %v1309
    %v1796 = vpop.f32.mrb[0].mxu0
    %v1797 = vadd.f32 %v1389, %v1796
    %v1798 = vpop.f32.mrb[0].mxu0
    %1799 = vmatprep.mubr.f32.mxu0 0.0
    %1800 = vmatmul.mubr.f32.gmra.mrb[0].mxu0 %v1310
    %v1801 = vpop.f32.mrb[0].mxu0
    %v1802 = vadd.f32 %v1389, %v1801
    %v1803 = vpop.f32.mrb[0].mxu0
    %1804 = vmatprep.mubr.f32.mxu0 0.0
    %1805 = vmatmul.mubr.f32.gmra.mrb[0].mxu0 %v1311
    %v1806 = vpop.f32.mrb[0].mxu0
    %v1807 = vadd.f32 %v1389, %v1806
    %v1808 = vpop.f32.mrb[0].mxu0
    %1809 = vmatprep.mubr.f32.mxu0 0.0
    %1810 = vmatmul.mubr.f32.gmra.mrb[0].mxu0 %v1312
    %v1811 = vpop.f32.mrb[0].mxu0
    %v1812 = vadd.f32 %v1389, %v1811
    %v1813 = vpop.f32.mrb[0].mxu0
    %1814 = vmatprep.mubr.f32.mxu0 0.0
    %1815 = vmatmul.mubr.f32.gmra.mrb[0].mxu0 %v1313
    %v1816 = vpop.f32.mrb[0].mxu0
    %v1817 = vadd.f32 %v1389, %v1816
    %v1818 = vpop.f32.mrb[0].mxu0
    %1819 = vmatprep.mubr.f32.mxu0 0.0
    %1820 = vmatmul.mubr.f32.gmra.mrb[0].mxu0 %v1314
    %v1821 = vpop.f32.mrb[0].mxu0
    %v1822 = vadd.f32 %v1389, %v1821
    %v1823 = vpop.f32.mrb[0].mxu0
    %1824 = vmatprep.mubr.f32.mxu0 0.0
    %1825 = vmatmul.mubr.f32.gmra.mrb[0].mxu0 %v1315
    %v1826 = vpop.f32.mrb[0].mxu0
    %v1827 = vadd.f32 %v1389, %v1826
    %v1828 = vpop.f32.mrb[0].mxu0
    %1829 = vmatprep.mubr.f32.mxu0 0.0
    %1830 = vmatmul.mubr.f32.gmra.mrb[0].mxu0 %v1316
    %v1831 = vpop.f32.mrb[0].mxu0
    %v1832 = vadd.f32 %v1389, %v1831
    %v1833 = vpop.f32.mrb[0].mxu0
    %1834 = vmatprep.mubr.f32.mxu0 0.0
    %1835 = vmatmul.mubr.f32.gmra.mrb[0].mxu0 %v1317
    %v1836 = vpop.f32.mrb[0].mxu0
    %v1837 = vadd.f32 %v1389, %v1836
    %v1838 = vpop.f32.mrb[0].mxu0
    %1839 = vmatprep.mubr.f32.mxu0 0.0
    %1840 = vmatmul.mubr.f32.gmra.mrb[0].mxu0 %v1318
    %v1841 = vpop.f32.mrb[0].mxu0
    %v1842 = vadd.f32 %v1389, %v1841
    %v1843 = vpop.f32.mrb[0].mxu0
    %1844 = vmatprep.mubr.f32.mxu0 0.0
    %1845 = vmatmul.mubr.f32.gmra.mrb[0].mxu0 %v1319
    %v1846 = vpop.f32.mrb[0].mxu0
    %v1847 = vadd.f32 %v1389, %v1846
    %v1848 = vpop.f32.mrb[0].mxu0
    %1849 = vmatprep.mubr.f32.mxu0 0.0
    %1850 = vmatmul.mubr.f32.gmra.mrb[0].mxu0 %v1320
    %v1851 = vpop.f32.mrb[0].mxu0
    %v1852 = vadd.f32 %v1389, %v1851
    %v1853 = vpop.f32.mrb[0].mxu0
    %1854 = vmatprep.mubr.f32.mxu0 0.0
    %1855 = vmatmul.mubr.f32.gmra.mrb[0].mxu0 %v1321
    %v1856 = vpop.f32.mrb[0].mxu0
    %v1857 = vadd.f32 %v1389, %v1856
    %v1858 = vpop.f32.mrb[0].mxu0
    %1859 = vmatprep.mubr.f32.mxu0 0.0
    %1860 = vmatmul.mubr.f32.gmra.mrb[0].mxu0 %v1322
    %v1861 = vpop.f32.mrb[0].mxu0
    %v1862 = vadd.f32 %v1389, %v1861
    %v1863 = vpop.f32.mrb[0].mxu0
    %1864 = vmatprep.mubr.f32.mxu0 0.0
    %1865 = vmatmul.mubr.f32.gmra.mrb[0].mxu0 %v1323
    %v1866 = vpop.f32.mrb[0].mxu0
    %v1867 = vadd.f32 %v1389, %v1866
    %v1868 = vpop.f32.mrb[0].mxu0
    %1869 = vmatprep.mubr.f32.mxu0 0.0
    %1870 = vmatmul.mubr.f32.gmra.mrb[0].mxu0 %v1324
    %v1871 = vpop.f32.mrb[0].mxu0
    %v1872 = vadd.f32 %v1389, %v1871
    %v1873 = vpop.f32.mrb[0].mxu0
    %1874 = vmatprep.mubr.f32.mxu0 0.0
    %1875 = vmatmul.mubr.f32.gmra.mrb[0].mxu0 %v1325
    %v1876 = vpop.f32.mrb[0].mxu0
    %v1877 = vadd.f32 %v1389, %v1876
    %v1878 = vpop.f32.mrb[0].mxu0
    %1879 = vmatprep.mubr.f32.mxu0 0.0
    %1880 = vmatmul.mubr.f32.gmra.mrb[0].mxu0 %v1326
    %v1881 = vpop.f32.mrb[0].mxu0
    %v1882 = vadd.f32 %v1389, %v1881
    %v1883 = vpop.f32.mrb[0].mxu0
    %1884 = vmatprep.mubr.f32.mxu0 0.0
    %1885 = vmatmul.mubr.f32.gmra.mrb[0].mxu0 %v1327
    %v1886 = vpop.f32.mrb[0].mxu0
    %v1887 = vadd.f32 %v1389, %v1886
    %v1888 = vpop.f32.mrb[0].mxu0
    %1889 = vmatprep.mubr.f32.mxu0 0.0
    %1890 = vmatmul.mubr.f32.gmra.mrb[0].mxu0 %v1328
    %v1891 = vpop.f32.mrb[0].mxu0
    %v1892 = vadd.f32 %v1389, %v1891
    %v1893 = vpop.f32.mrb[0].mxu0
    %1894 = vmatprep.mubr.f32.mxu0 0.0
    %1895 = vmatmul.mubr.f32.gmra.mrb[0].mxu0 %v1329
    %v1896 = vpop.f32.mrb[0].mxu0
    %v1897 = vadd.f32 %v1389, %v1896
    %v1898 = vpop.f32.mrb[0].mxu0
    %1899 = vmatprep.mubr.f32.mxu0 0.0
    %1900 = vmatmul.mubr.f32.gmra.mrb[0].mxu0 %v1330
    %v1901 = vpop.f32.mrb[0].mxu0
    %v1902 = vadd.f32 %v1389, %v1901
    %v1903 = vpop.f32.mrb[0].mxu0
    %1904 = vmatprep.mubr.f32.mxu0 0.0
    %1905 = vmatmul.mubr.f32.gmra.mrb[0].mxu0 %v1331
    %v1906 = vpop.f32.mrb[0].mxu0
    %v1907 = vadd.f32 %v1389, %v1906
    %v1908 = vpop.f32.mrb[0].mxu0
    %1909 = vmatprep.mubr.f32.mxu0 0.0
    %1910 = vmatmul.mubr.f32.gmra.mrb[0].mxu0 %v1332
    %v1911 = vpop.f32.mrb[0].mxu0
    %v1912 = vadd.f32 %v1389, %v1911
    %v1913 = vpop.f32.mrb[0].mxu0
    %1914 = vmatprep.mubr.f32.mxu0 0.0
    %1915 = vmatmul.mubr.f32.gmra.mrb[0].mxu0 %v1333
    %v1916 = vpop.f32.mrb[0].mxu0
    %v1917 = vadd.f32 %v1389, %v1916
    %v1918 = vpop.f32.mrb[0].mxu0
    %1919 = vmatprep.mubr.f32.mxu0 0.0
    %1920 = vmatmul.mubr.f32.gmra.mrb[0].mxu0 %v1334
    %v1921 = vpop.f32.mrb[0].mxu0
    %v1922 = vadd.f32 %v1389, %v1921
    %v1923 = vpop.f32.mrb[0].mxu0
    %1924 = vmatprep.mubr.f32.mxu0 0.0
    %1925 = vmatmul.mubr.f32.gmra.mrb[0].mxu0 %v1335
    %v1926 = vpop.f32.mrb[0].mxu0
    %v1927 = vadd.f32 %v1389, %v1926
    %v1928 = vpop.f32.mrb[0].mxu0
    %1929 = vmatprep.mubr.f32.mxu0 0.0
    %1930 = vmatmul.mubr.f32.gmra.mrb[0].mxu0 %v1336
    %v1931 = vpop.f32.mrb[0].mxu0
    %v1932 = vadd.f32 %v1389, %v1931
    %v1933 = vpop.f32.mrb[0].mxu0
    %1934 = vmatprep.mubr.f32.mxu0 0.0
    %1935 = vmatmul.mubr.f32.gmra.mrb[0].mxu0 %v1337
    %v1936 = vpop.f32.mrb[0].mxu0
    %v1937 = vadd.f32 %v1389, %v1936
    %v1938 = vpop.f32.mrb[0].mxu0
    %1939 = vmatprep.mubr.f32.mxu0 0.0
    %1940 = vmatmul.mubr.f32.gmra.mrb[0].mxu0 %v1338
    %v1941 = vpop.f32.mrb[0].mxu0
    %v1942 = vadd.f32 %v1389, %v1941
    %v1943 = vpop.f32.mrb[0].mxu0
    %1944 = vmatprep.mubr.f32.mxu0 0.0
    %1945 = vmatmul.mubr.f32.gmra.mrb[0].mxu0 %v1339
    %v1946 = vpop.f32.mrb[0].mxu0
    %v1947 = vadd.f32 %v1389, %v1946
    %v1948 = vpop.f32.mrb[0].mxu0
    %1949 = vmatprep.mubr.f32.mxu0 0.0
    %1950 = vmatmul.mubr.f32.gmra.mrb[0].mxu0 %v1340
    %v1951 = vpop.f32.mrb[0].mxu0
    %v1952 = vadd.f32 %v1389, %v1951
    %v1953 = vpop.f32.mrb[0].mxu0
    %1954 = vmatprep.mubr.f32.mxu0 0.0
    %1955 = vmatmul.mubr.f32.gmra.mrb[0].mxu0 %v1341
    %v1956 = vpop.f32.mrb[0].mxu0
    %v1957 = vadd.f32 %v1389, %v1956
    %v1958 = vpop.f32.mrb[0].mxu0
    %1959 = vmatprep.mubr.f32.mxu0 0.0
    %1960 = vmatmul.mubr.f32.gmra.mrb[0].mxu0 %v1342
    %v1961 = vpop.f32.mrb[0].mxu0
    %v1962 = vadd.f32 %v1389, %v1961
    %v1963 = vpop.f32.mrb[0].mxu0
    %1964 = vmatprep.mubr.f32.mxu0 0.0
    %1965 = vmatmul.mubr.f32.gmra.mrb[0].mxu0 %v1343
    %v1966 = vpop.f32.mrb[0].mxu0
    %v1967 = vadd.f32 %v1389, %v1966
    %v1968 = vpop.f32.mrb[0].mxu0
    %1969 = vmatprep.mubr.f32.mxu0 0.0
    %1970 = vmatmul.mubr.f32.gmra.mrb[0].mxu0 %v1344
    %v1971 = vpop.f32.mrb[0].mxu0
    %v1972 = vadd.f32 %v1389, %v1971
    %v1973 = vpop.f32.mrb[0].mxu0
    %1974 = vmatprep.mubr.f32.mxu0 0.0
    %1975 = vmatmul.mubr.f32.gmra.mrb[0].mxu0 %v1345
    %v1976 = vpop.f32.mrb[0].mxu0
    %v1977 = vadd.f32 %v1389, %v1976
    %v1978 = vpop.f32.mrb[0].mxu0
    %1979 = vmatprep.mubr.f32.mxu0 0.0
    %1980 = vmatmul.mubr.f32.gmra.mrb[0].mxu0 %v1346
    %v1981 = vpop.f32.mrb[0].mxu0
    %v1982 = vadd.f32 %v1389, %v1981
    %v1983 = vpop.f32.mrb[0].mxu0
    %1984 = vmatprep.mubr.f32.mxu0 0.0
    %1985 = vmatmul.mubr.f32.gmra.mrb[0].mxu0 %v1347
    %v1986 = vpop.f32.mrb[0].mxu0
    %v1987 = vadd.f32 %v1389, %v1986
    %v1988 = vpop.f32.mrb[0].mxu0
    %1989 = vmatprep.mubr.f32.mxu0 0.0
    %1990 = vmatmul.mubr.f32.gmra.mrb[0].mxu0 %v1348
    %v1991 = vpop.f32.mrb[0].mxu0
    %v1992 = vadd.f32 %v1389, %v1991
    %v1993 = vpop.f32.mrb[0].mxu0
    %1994 = vmatprep.mubr.f32.mxu0 0.0
    %1995 = vmatmul.mubr.f32.gmra.mrb[0].mxu0 %v1349
    %v1996 = vpop.f32.mrb[0].mxu0
    %v1997 = vadd.f32 %v1389, %v1996
    %v1998 = vpop.f32.mrb[0].mxu0
    %1999 = vmatprep.mubr.f32.mxu0 0.0
    %2000 = vmatmul.mubr.f32.gmra.mrb[0].mxu0 %v1350
    %v2001 = vpop.f32.mrb[0].mxu0
    %v2002 = vadd.f32 %v1389, %v2001
    %v2003 = vpop.f32.mrb[0].mxu0
    %2004 = vmatprep.mubr.f32.mxu0 0.0
    %2005 = vmatmul.mubr.f32.gmra.mrb[0].mxu0 %v1351
    %v2006 = vpop.f32.mrb[0].mxu0
    %v2007 = vadd.f32 %v1389, %v2006
    %v2008 = vpop.f32.mrb[0].mxu0
    %2009 = vmatprep.mubr.f32.mxu0 0.0
    %2010 = vmatmul.mubr.f32.gmra.mrb[0].mxu0 %v1352
    %v2011 = vpop.f32.mrb[0].mxu0
    %v2012 = vadd.f32 %v1389, %v2011
    %v2013 = vpop.f32.mrb[0].mxu0
    %2014 = vmatprep.mubr.f32.mxu0 0.0
    %2015 = vmatmul.mubr.f32.gmra.mrb[0].mxu0 %v1353
    %v2016 = vpop.f32.mrb[0].mxu0
    %v2017 = vadd.f32 %v1389, %v2016
    %v2018 = vpop.f32.mrb[0].mxu0
    %2019 = vmatprep.mubr.f32.mxu0 0.0
    %2020 = vmatmul.mubr.f32.gmra.mrb[0].mxu0 %v1354
    %v2021 = vpop.f32.mrb[0].mxu0
    %v2022 = vadd.f32 %v1389, %v2021
    %v2023 = vpop.f32.mrb[0].mxu0
    %2024 = vmatprep.mubr.f32.mxu0 0.0
    %2025 = vmatmul.mubr.f32.gmra.mrb[0].mxu0 %v1355
    %v2026 = vpop.f32.mrb[0].mxu0
    %v2027 = vadd.f32 %v1389, %v2026
    %v2028 = vpop.f32.mrb[0].mxu0
    %2029 = vmatprep.mubr.f32.mxu0 0.0
    %2030 = vmatmul.mubr.f32.gmra.mrb[0].mxu0 %v1356
    %v2031 = vpop.f32.mrb[0].mxu0
    %v2032 = vadd.f32 %v1389, %v2031
    %v2033 = vpop.f32.mrb[0].mxu0
    %2034 = vmatprep.mubr.f32.mxu0 0.0
    %2035 = vmatmul.mubr.f32.gmra.mrb[0].mxu0 %v1357
    %v2036 = vpop.f32.mrb[0].mxu0
    %v2037 = vadd.f32 %v1389, %v2036
    %v2038 = vpop.f32.mrb[0].mxu0
    %2039 = vmatprep.mubr.f32.mxu0 0.0
    %2040 = vmatmul.mubr.f32.gmra.mrb[0].mxu0 %v1358
    %v2041 = vpop.f32.mrb[0].mxu0
    %v2042 = vadd.f32 %v1389, %v2041
    %v2043 = vpop.f32.mrb[0].mxu0
    %2044 = vmatprep.mubr.f32.mxu0 0.0
    %2045 = vmatmul.mubr.f32.gmra.mrb[0].mxu0 %v1359
    %v2046 = vpop.f32.mrb[0].mxu0
    %v2047 = vadd.f32 %v1389, %v2046
    %v2048 = vpop.f32.mrb[0].mxu0
    %2049 = vmatprep.mubr.f32.mxu0 0.0
    %2050 = vmatmul.mubr.f32.gmra.mrb[0].mxu0 %v1360
    %v2051 = vpop.f32.mrb[0].mxu0
    %v2052 = vadd.f32 %v1389, %v2051
    %v2053 = vpop.f32.mrb[0].mxu0
    %2054 = vmatprep.mubr.f32.mxu0 0.0
    %2055 = vmatmul.mubr.f32.gmra.mrb[0].mxu0 %v1361
    %v2056 = vpop.f32.mrb[0].mxu0
    %v2057 = vadd.f32 %v1389, %v2056
    %v2058 = vpop.f32.mrb[0].mxu0
    %2059 = vmatprep.mubr.f32.mxu0 0.0
    %2060 = vmatmul.mubr.f32.gmra.mrb[0].mxu0 %v1362
    %v2061 = vpop.f32.mrb[0].mxu0
    %v2062 = vadd.f32 %v1389, %v2061
    %v2063 = vpop.f32.mrb[0].mxu0
    %2064 = vmatprep.mubr.f32.mxu0 0.0
    %2065 = vmatmul.mubr.f32.gmra.mrb[0].mxu0 %v1363
    %v2066 = vpop.f32.mrb[0].mxu0
    %v2067 = vadd.f32 %v1389, %v2066
    %v2068 = vpop.f32.mrb[0].mxu0
    %2069 = vmatprep.mubr.f32.mxu0 0.0
    %2070 = vmatmul.mubr.f32.gmra.mrb[0].mxu0 %v1364
    %v2071 = vpop.f32.mrb[0].mxu0
    %v2072 = vadd.f32 %v1389, %v2071
    %v2073 = vpop.f32.mrb[0].mxu0
    %2074 = vmatprep.mubr.f32.mxu0 0.0
    %2075 = vmatmul.mubr.f32.gmra.mrb[0].mxu0 %v1365
    %v2076 = vpop.f32.mrb[0].mxu0
    %v2077 = vadd.f32 %v1389, %v2076
    %v2078 = vpop.f32.mrb[0].mxu0
    %2079 = vmatprep.mubr.f32.mxu0 0.0
    %2080 = vmatmul.mubr.f32.gmra.mrb[0].mxu0 %v1366
    %v2081 = vpop.f32.mrb[0].mxu0
    %v2082 = vadd.f32 %v1389, %v2081
    %v2083 = vpop.f32.mrb[0].mxu0
    %2084 = vmatprep.mubr.f32.mxu0 0.0
    %2085 = vmatmul.mubr.f32.gmra.mrb[0].mxu0 %v1367
    %v2086 = vpop.f32.mrb[0].mxu0
    %v2087 = vadd.f32 %v1389, %v2086
    %v2088 = vpop.f32.mrb[0].mxu0
    %2089 = vmatprep.mubr.f32.mxu0 0.0
    %2090 = vmatmul.mubr.f32.gmra.mrb[0].mxu0 %v1368
    %v2091 = vpop.f32.mrb[0].mxu0
    %v2092 = vadd.f32 %v1389, %v2091
    %v2093 = vpop.f32.mrb[0].mxu0
    %2094 = vdwg.mxu0
    %v2095 = vmax.f32 %v1457, 0.0
    %v2096 = vmax.f32 %v1462, 0.0
    %v2097 = vmax.f32 %v1467, 0.0
    %v2098 = vmax.f32 %v1472, 0.0
    %v2099 = vmax.f32 %v1477, 0.0
    %v2100 = vmax.f32 %v1482, 0.0
    %v2101 = vmax.f32 %v1487, 0.0
    %v2102 = vmax.f32 %v1492, 0.0
    %v2103 = vmax.f32 %v1497, 0.0
    %v2104 = vmax.f32 %v1502, 0.0
    %v2105 = vmax.f32 %v1507, 0.0
    %v2106 = vmax.f32 %v1512, 0.0
    %v2107 = vmax.f32 %v1517, 0.0
    %v2108 = vmax.f32 %v1522, 0.0
    %v2109 = vmax.f32 %v1527, 0.0
    %v2110 = vmax.f32 %v1532, 0.0
    %v2111 = vmax.f32 %v1537, 0.0
    %v2112 = vmax.f32 %v1542, 0.0
    %v2113 = vmax.f32 %v1547, 0.0
    %v2114 = vmax.f32 %v1552, 0.0
    %v2115 = vmax.f32 %v1557, 0.0
    %v2116 = vmax.f32 %v1562, 0.0
    %v2117 = vmax.f32 %v1567, 0.0
    %v2118 = vmax.f32 %v1572, 0.0
    %v2119 = vmax.f32 %v1577, 0.0
    %v2120 = vmax.f32 %v1582, 0.0
    %v2121 = vmax.f32 %v1587, 0.0
    %v2122 = vmax.f32 %v1592, 0.0
    %v2123 = vmax.f32 %v1597, 0.0
    %v2124 = vmax.f32 %v1602, 0.0
    %v2125 = vmax.f32 %v1607, 0.0
    %v2126 = vmax.f32 %v1612, 0.0
    %v2127 = vmax.f32 %v1617, 0.0
    %v2128 = vmax.f32 %v1622, 0.0
    %v2129 = vmax.f32 %v1627, 0.0
    %v2130 = vmax.f32 %v1632, 0.0
    %v2131 = vmax.f32 %v1637, 0.0
    %v2132 = vmax.f32 %v1642, 0.0
    %v2133 = vmax.f32 %v1647, 0.0
    %v2134 = vmax.f32 %v1652, 0.0
    %v2135 = vmax.f32 %v1657, 0.0
    %v2136 = vmax.f32 %v1662, 0.0
    %v2137 = vmax.f32 %v1667, 0.0
    %v2138 = vmax.f32 %v1672, 0.0
    %v2139 = vmax.f32 %v1677, 0.0
    %v2140 = vmax.f32 %v1682, 0.0
    %v2141 = vmax.f32 %v1687, 0.0
    %v2142 = vmax.f32 %v1692, 0.0
    %v2143 = vmax.f32 %v1697, 0.0
    %v2144 = vmax.f32 %v1702, 0.0
    %v2145 = vmax.f32 %v1707, 0.0
    %v2146 = vmax.f32 %v1712, 0.0
    %v2147 = vmax.f32 %v1717, 0.0
    %v2148 = vmax.f32 %v1722, 0.0
    %v2149 = vmax.f32 %v1727, 0.0
    %v2150 = vmax.f32 %v1732, 0.0
    %v2151 = vmax.f32 %v1737, 0.0
    %v2152 = vmax.f32 %v1742, 0.0
    %v2153 = vmax.f32 %v1747, 0.0
    %v2154 = vmax.f32 %v1752, 0.0
    %v2155 = vmax.f32 %v1757, 0.0
    %v2156 = vmax.f32 %v1762, 0.0
    %v2157 = vmax.f32 %v1767, 0.0
    %v2158 = vmax.f32 %v1772, 0.0
    %v2159 = vmax.f32 %v1777, 0.0
    %v2160 = vmax.f32 %v1782, 0.0
    %v2161 = vmax.f32 %v1787, 0.0
    %v2162 = vmax.f32 %v1792, 0.0
    %v2163 = vmax.f32 %v1797, 0.0
    %v2164 = vmax.f32 %v1802, 0.0
    %v2165 = vmax.f32 %v1807, 0.0
    %v2166 = vmax.f32 %v1812, 0.0
    %v2167 = vmax.f32 %v1817, 0.0
    %v2168 = vmax.f32 %v1822, 0.0
    %v2169 = vmax.f32 %v1827, 0.0
    %v2170 = vmax.f32 %v1832, 0.0
    %v2171 = vmax.f32 %v1837, 0.0
    %v2172 = vmax.f32 %v1842, 0.0
    %v2173 = vmax.f32 %v1847, 0.0
    %v2174 = vmax.f32 %v1852, 0.0
    %v2175 = vmax.f32 %v1857, 0.0
    %v2176 = vmax.f32 %v1862, 0.0
    %v2177 = vmax.f32 %v1867, 0.0
    %v2178 = vmax.f32 %v1872, 0.0
    %v2179 = vmax.f32 %v1877, 0.0
    %v2180 = vmax.f32 %v1882, 0.0
    %v2181 = vmax.f32 %v1887, 0.0
    %v2182 = vmax.f32 %v1892, 0.0
    %v2183 = vmax.f32 %v1897, 0.0
    %v2184 = vmax.f32 %v1902, 0.0
    %v2185 = vmax.f32 %v1907, 0.0
    %v2186 = vmax.f32 %v1912, 0.0
    %v2187 = vmax.f32 %v1917, 0.0
    %v2188 = vmax.f32 %v1922, 0.0
    %v2189 = vmax.f32 %v1927, 0.0
    %v2190 = vmax.f32 %v1932, 0.0
    %v2191 = vmax.f32 %v1937, 0.0
    %v2192 = vmax.f32 %v1942, 0.0
    %v2193 = vmax.f32 %v1947, 0.0
    %v2194 = vmax.f32 %v1952, 0.0
    %v2195 = vmax.f32 %v1957, 0.0
    %v2196 = vmax.f32 %v1962, 0.0
    %v2197 = vmax.f32 %v1967, 0.0
    %v2198 = vmax.f32 %v1972, 0.0
    %v2199 = vmax.f32 %v1977, 0.0
    %v2200 = vmax.f32 %v1982, 0.0
    %v2201 = vmax.f32 %v1987, 0.0
    %v2202 = vmax.f32 %v1992, 0.0
    %v2203 = vmax.f32 %v1997, 0.0
    %v2204 = vmax.f32 %v2002, 0.0
    %v2205 = vmax.f32 %v2007, 0.0
    %v2206 = vmax.f32 %v2012, 0.0
    %v2207 = vmax.f32 %v2017, 0.0
    %v2208 = vmax.f32 %v2022, 0.0
    %v2209 = vmax.f32 %v2027, 0.0
    %v2210 = vmax.f32 %v2032, 0.0
    %v2211 = vmax.f32 %v2037, 0.0
    %v2212 = vmax.f32 %v2042, 0.0
    %v2213 = vmax.f32 %v2047, 0.0
    %v2214 = vmax.f32 %v2052, 0.0
    %v2215 = vmax.f32 %v2057, 0.0
    %v2216 = vmax.f32 %v2062, 0.0
    %v2217 = vmax.f32 %v2067, 0.0
    %v2218 = vmax.f32 %v2072, 0.0
    %v2219 = vmax.f32 %v2077, 0.0
    %v2220 = vmax.f32 %v2082, 0.0
    %v2221 = vmax.f32 %v2087, 0.0
    %v2222 = vmax.f32 %v2092, 0.0
    %v2223 = vld [vmem:[%s1 + $0xc0] sm:$0x1]
    %v2224 = vld [vmem:[%s1 + $0xc8] sm:$0x1]
    %2226 = vset.pattern.permute.xlu0 0
    %2227 = vperm.xlu0 %2226, %v2224
    %v2228 = vpop.permute.xlu0 %2227
    %2230 = vmatprep.subr.mxu0 0.0
    %2231 = vmatpush1.xpose.msra.mxu0 %v2095
    %2232 = vmatprep.subr.mxu0 0.0
    %2233 = vmatpush1.xpose.msra.mxu0 %v2096
    %2234 = vmatprep.subr.mxu0 0.0
    %2235 = vmatpush1.xpose.msra.mxu0 %v2097
    %2236 = vmatprep.subr.mxu0 0.0
    %2237 = vmatpush1.xpose.msra.mxu0 %v2098
    %2238 = vmatprep.subr.mxu0 0.0
    %2239 = vmatpush1.xpose.msra.mxu0 %v2099
    %2240 = vmatprep.subr.mxu0 0.0
    %2241 = vmatpush1.xpose.msra.mxu0 %v2100
    %2242 = vmatprep.subr.mxu0 0.0
    %2243 = vmatpush1.xpose.msra.mxu0 %v2101
    %2244 = vmatprep.subr.mxu0 0.0
    %2245 = vmatpush1.xpose.msra.mxu0 %v2102
    %2246 = vmatprep.subr.mxu0 0.0
    %2247 = vmatpush1.xpose.msra.mxu0 %v2103
    %2248 = vmatprep.subr.mxu0 0.0
    %2249 = vmatpush1.xpose.msra.mxu0 %v2104
    %2250 = vmatprep.subr.mxu0 0.0
    %2251 = vmatpush1.xpose.msra.mxu0 %v2105
    %2252 = vmatprep.subr.mxu0 0.0
    %2253 = vmatpush1.xpose.msra.mxu0 %v2106
    %2254 = vmatprep.subr.mxu0 0.0
    %2255 = vmatpush1.xpose.msra.mxu0 %v2107
    %2256 = vmatprep.subr.mxu0 0.0
    %2257 = vmatpush1.xpose.msra.mxu0 %v2108
    %2258 = vmatprep.subr.mxu0 0.0
    %2259 = vmatpush1.xpose.msra.mxu0 %v2109
    %2260 = vmatprep.subr.mxu0 0.0
    %2261 = vmatpush1.xpose.msra.mxu0 %v2110
    %2262 = vmatprep.subr.mxu0 0.0
    %2263 = vmatpush1.xpose.msra.mxu0 %v2111
    %2264 = vmatprep.subr.mxu0 0.0
    %2265 = vmatpush1.xpose.msra.mxu0 %v2112
    %2266 = vmatprep.subr.mxu0 0.0
    %2267 = vmatpush1.xpose.msra.mxu0 %v2113
    %2268 = vmatprep.subr.mxu0 0.0
    %2269 = vmatpush1.xpose.msra.mxu0 %v2114
    %2270 = vmatprep.subr.mxu0 0.0
    %2271 = vmatpush1.xpose.msra.mxu0 %v2115
    %2272 = vmatprep.subr.mxu0 0.0
    %2273 = vmatpush1.xpose.msra.mxu0 %v2116
    %2274 = vmatprep.subr.mxu0 0.0
    %2275 = vmatpush1.xpose.msra.mxu0 %v2117
    %2276 = vmatprep.subr.mxu0 0.0
    %2277 = vmatpush1.xpose.msra.mxu0 %v2118
    %2278 = vmatprep.subr.mxu0 0.0
    %2279 = vmatpush1.xpose.msra.mxu0 %v2119
    %2280 = vmatprep.subr.mxu0 0.0
    %2281 = vmatpush1.xpose.msra.mxu0 %v2120
    %2282 = vmatprep.subr.mxu0 0.0
    %2283 = vmatpush1.xpose.msra.mxu0 %v2121
    %2284 = vmatprep.subr.mxu0 0.0
    %2285 = vmatpush1.xpose.msra.mxu0 %v2122
    %2286 = vmatprep.subr.mxu0 0.0
    %2287 = vmatpush1.xpose.msra.mxu0 %v2123
    %2288 = vmatprep.subr.mxu0 0.0
    %2289 = vmatpush1.xpose.msra.mxu0 %v2124
    %2290 = vmatprep.subr.mxu0 0.0
    %2291 = vmatpush1.xpose.msra.mxu0 %v2125
    %2292 = vmatprep.subr.mxu0 0.0
    %2293 = vmatpush1.xpose.msra.mxu0 %v2126
    %2294 = vmatprep.mubr.f32.mxu0 0.0
    %2295 = vmatmul.mubr.f32.gmra.mrb[0].mxu0 %v2223
    %v2296 = vpop.f32.mrb[0].mxu0
    %v2297 = vadd.f32 %v2228, %v2296
    %v2298 = vpop.f32.mrb[0].mxu0
    %v2299 = vadd.f32 %v2228, %v2298
    %2300 = vdwg.mxu0
    %2301 = vmatprep.subr.mxu0 0.0
    %2302 = vmatpush1.xpose.msra.mxu0 %v2127
    %2303 = vmatprep.subr.mxu0 0.0
    %2304 = vmatpush1.xpose.msra.mxu0 %v2128
    %2305 = vmatprep.subr.mxu0 0.0
    %2306 = vmatpush1.xpose.msra.mxu0 %v2129
    %2307 = vmatprep.subr.mxu0 0.0
    %2308 = vmatpush1.xpose.msra.mxu0 %v2130
    %2309 = vmatprep.subr.mxu0 0.0
    %2310 = vmatpush1.xpose.msra.mxu0 %v2131
    %2311 = vmatprep.subr.mxu0 0.0
    %2312 = vmatpush1.xpose.msra.mxu0 %v2132
    %2313 = vmatprep.subr.mxu0 0.0
    %2314 = vmatpush1.xpose.msra.mxu0 %v2133
    %2315 = vmatprep.subr.mxu0 0.0
    %2316 = vmatpush1.xpose.msra.mxu0 %v2134
    %2317 = vmatprep.subr.mxu0 0.0
    %2318 = vmatpush1.xpose.msra.mxu0 %v2135
    %2319 = vmatprep.subr.mxu0 0.0
    %2320 = vmatpush1.xpose.msra.mxu0 %v2136
    %2321 = vmatprep.subr.mxu0 0.0
    %2322 = vmatpush1.xpose.msra.mxu0 %v2137
    %2323 = vmatprep.subr.mxu0 0.0
    %2324 = vmatpush1.xpose.msra.mxu0 %v2138
    %2325 = vmatprep.subr.mxu0 0.0
    %2326 = vmatpush1.xpose.msra.mxu0 %v2139
    %2327 = vmatprep.subr.mxu0 0.0
    %2328 = vmatpush1.xpose.msra.mxu0 %v2140
    %2329 = vmatprep.subr.mxu0 0.0
    %2330 = vmatpush1.xpose.msra.mxu0 %v2141
    %2331 = vmatprep.subr.mxu0 0.0
    %2332 = vmatpush1.xpose.msra.mxu0 %v2142
    %2333 = vmatprep.subr.mxu0 0.0
    %2334 = vmatpush1.xpose.msra.mxu0 %v2143
    %2335 = vmatprep.subr.mxu0 0.0
    %2336 = vmatpush1.xpose.msra.mxu0 %v2144
    %2337 = vmatprep.subr.mxu0 0.0
    %2338 = vmatpush1.xpose.msra.mxu0 %v2145
    %2339 = vmatprep.subr.mxu0 0.0
    %2340 = vmatpush1.xpose.msra.mxu0 %v2146
    %2341 = vmatprep.subr.mxu0 0.0
    %2342 = vmatpush1.xpose.msra.mxu0 %v2147
    %2343 = vmatprep.subr.mxu0 0.0
    %2344 = vmatpush1.xpose.msra.mxu0 %v2148
    %2345 = vmatprep.subr.mxu0 0.0
    %2346 = vmatpush1.xpose.msra.mxu0 %v2149
    %2347 = vmatprep.subr.mxu0 0.0
    %2348 = vmatpush1.xpose.msra.mxu0 %v2150
    %2349 = vmatprep.subr.mxu0 0.0
    %2350 = vmatpush1.xpose.msra.mxu0 %v2151
    %2351 = vmatprep.subr.mxu0 0.0
    %2352 = vmatpush1.xpose.msra.mxu0 %v2152
    %2353 = vmatprep.subr.mxu0 0.0
    %2354 = vmatpush1.xpose.msra.mxu0 %v2153
    %2355 = vmatprep.subr.mxu0 0.0
    %2356 = vmatpush1.xpose.msra.mxu0 %v2154
    %2357 = vmatprep.subr.mxu0 0.0
    %2358 = vmatpush1.xpose.msra.mxu0 %v2155
    %2359 = vmatprep.subr.mxu0 0.0
    %2360 = vmatpush1.xpose.msra.mxu0 %v2156
    %2361 = vmatprep.subr.mxu0 0.0
    %2362 = vmatpush1.xpose.msra.mxu0 %v2157
    %2363 = vmatprep.subr.mxu0 0.0
    %2364 = vmatpush1.xpose.msra.mxu0 %v2158
    %2365 = vmatprep.mubr.f32.mxu0 0.0
    %2366 = vmatmul.mubr.f32.gmra.mrb[0].mxu0 %v2223
    %v2367 = vpop.f32.mrb[0].mxu0
    %v2368 = vadd.f32 %v2228, %v2367
    %v2369 = vpop.f32.mrb[0].mxu0
    %v2370 = vadd.f32 %v2228, %v2369
    %2371 = vdwg.mxu0
    %2372 = vmatprep.subr.mxu0 0.0
    %2373 = vmatpush1.xpose.msra.mxu0 %v2159
    %2374 = vmatprep.subr.mxu0 0.0
    %2375 = vmatpush1.xpose.msra.mxu0 %v2160
    %2376 = vmatprep.subr.mxu0 0.0
    %2377 = vmatpush1.xpose.msra.mxu0 %v2161
    %2378 = vmatprep.subr.mxu0 0.0
    %2379 = vmatpush1.xpose.msra.mxu0 %v2162
    %2380 = vmatprep.subr.mxu0 0.0
    %2381 = vmatpush1.xpose.msra.mxu0 %v2163
    %2382 = vmatprep.subr.mxu0 0.0
    %2383 = vmatpush1.xpose.msra.mxu0 %v2164
    %2384 = vmatprep.subr.mxu0 0.0
    %2385 = vmatpush1.xpose.msra.mxu0 %v2165
    %2386 = vmatprep.subr.mxu0 0.0
    %2387 = vmatpush1.xpose.msra.mxu0 %v2166
    %2388 = vmatprep.subr.mxu0 0.0
    %2389 = vmatpush1.xpose.msra.mxu0 %v2167
    %2390 = vmatprep.subr.mxu0 0.0
    %2391 = vmatpush1.xpose.msra.mxu0 %v2168
    %2392 = vmatprep.subr.mxu0 0.0
    %2393 = vmatpush1.xpose.msra.mxu0 %v2169
    %2394 = vmatprep.subr.mxu0 0.0
    %2395 = vmatpush1.xpose.msra.mxu0 %v2170
    %2396 = vmatprep.subr.mxu0 0.0
    %2397 = vmatpush1.xpose.msra.mxu0 %v2171
    %2398 = vmatprep.subr.mxu0 0.0
    %2399 = vmatpush1.xpose.msra.mxu0 %v2172
    %2400 = vmatprep.subr.mxu0 0.0
    %2401 = vmatpush1.xpose.msra.mxu0 %v2173
    %2402 = vmatprep.subr.mxu0 0.0
    %2403 = vmatpush1.xpose.msra.mxu0 %v2174
    %2404 = vmatprep.subr.mxu0 0.0
    %2405 = vmatpush1.xpose.msra.mxu0 %v2175
    %2406 = vmatprep.subr.mxu0 0.0
    %2407 = vmatpush1.xpose.msra.mxu0 %v2176
    %2408 = vmatprep.subr.mxu0 0.0
    %2409 = vmatpush1.xpose.msra.mxu0 %v2177
    %2410 = vmatprep.subr.mxu0 0.0
    %2411 = vmatpush1.xpose.msra.mxu0 %v2178
    %2412 = vmatprep.subr.mxu0 0.0
    %2413 = vmatpush1.xpose.msra.mxu0 %v2179
    %2414 = vmatprep.subr.mxu0 0.0
    %2415 = vmatpush1.xpose.msra.mxu0 %v2180
    %2416 = vmatprep.subr.mxu0 0.0
    %2417 = vmatpush1.xpose.msra.mxu0 %v2181
    %2418 = vmatprep.subr.mxu0 0.0
    %2419 = vmatpush1.xpose.msra.mxu0 %v2182
    %2420 = vmatprep.subr.mxu0 0.0
    %2421 = vmatpush1.xpose.msra.mxu0 %v2183
    %2422 = vmatprep.subr.mxu0 0.0
    %2423 = vmatpush1.xpose.msra.mxu0 %v2184
    %2424 = vmatprep.subr.mxu0 0.0
    %2425 = vmatpush1.xpose.msra.mxu0 %v2185
    %2426 = vmatprep.subr.mxu0 0.0
    %2427 = vmatpush1.xpose.msra.mxu0 %v2186
    %2428 = vmatprep.subr.mxu0 0.0
    %2429 = vmatpush1.xpose.msra.mxu0 %v2187
    %2430 = vmatprep.subr.mxu0 0.0
    %2431 = vmatpush1.xpose.msra.mxu0 %v2188
    %2432 = vmatprep.subr.mxu0 0.0
    %2433 = vmatpush1.xpose.msra.mxu0 %v2189
    %2434 = vmatprep.subr.mxu0 0.0
    %2435 = vmatpush1.xpose.msra.mxu0 %v2190
    %2436 = vmatprep.mubr.f32.mxu0 0.0
    %2437 = vmatmul.mubr.f32.gmra.mrb[0].mxu0 %v2223
    %v2438 = vpop.f32.mrb[0].mxu0
    %v2439 = vadd.f32 %v2228, %v2438
    %v2440 = vpop.f32.mrb[0].mxu0
    %v2441 = vadd.f32 %v2228, %v2440
    %2442 = vdwg.mxu0
    %2443 = vmatprep.subr.mxu0 0.0
    %2444 = vmatpush1.xpose.msra.mxu0 %v2191
    %2445 = vmatprep.subr.mxu0 0.0
    %2446 = vmatpush1.xpose.msra.mxu0 %v2192
    %2447 = vmatprep.subr.mxu0 0.0
    %2448 = vmatpush1.xpose.msra.mxu0 %v2193
    %2449 = vmatprep.subr.mxu0 0.0
    %2450 = vmatpush1.xpose.msra.mxu0 %v2194
    %2451 = vmatprep.subr.mxu0 0.0
    %2452 = vmatpush1.xpose.msra.mxu0 %v2195
    %2453 = vmatprep.subr.mxu0 0.0
    %2454 = vmatpush1.xpose.msra.mxu0 %v2196
    %2455 = vmatprep.subr.mxu0 0.0
    %2456 = vmatpush1.xpose.msra.mxu0 %v2197
    %2457 = vmatprep.subr.mxu0 0.0
    %2458 = vmatpush1.xpose.msra.mxu0 %v2198
    %2459 = vmatprep.subr.mxu0 0.0
    %2460 = vmatpush1.xpose.msra.mxu0 %v2199
    %2461 = vmatprep.subr.mxu0 0.0
    %2462 = vmatpush1.xpose.msra.mxu0 %v2200
    %2463 = vmatprep.subr.mxu0 0.0
    %2464 = vmatpush1.xpose.msra.mxu0 %v2201
    %2465 = vmatprep.subr.mxu0 0.0
    %2466 = vmatpush1.xpose.msra.mxu0 %v2202
    %2467 = vmatprep.subr.mxu0 0.0
    %2468 = vmatpush1.xpose.msra.mxu0 %v2203
    %2469 = vmatprep.subr.mxu0 0.0
    %2470 = vmatpush1.xpose.msra.mxu0 %v2204
    %2471 = vmatprep.subr.mxu0 0.0
    %2472 = vmatpush1.xpose.msra.mxu0 %v2205
    %2473 = vmatprep.subr.mxu0 0.0
    %2474 = vmatpush1.xpose.msra.mxu0 %v2206
    %2475 = vmatprep.subr.mxu0 0.0
    %2476 = vmatpush1.xpose.msra.mxu0 %v2207
    %2477 = vmatprep.subr.mxu0 0.0
    %2478 = vmatpush1.xpose.msra.mxu0 %v2208
    %2479 = vmatprep.subr.mxu0 0.0
    %2480 = vmatpush1.xpose.msra.mxu0 %v2209
    %2481 = vmatprep.subr.mxu0 0.0
    %2482 = vmatpush1.xpose.msra.mxu0 %v2210
    %2483 = vmatprep.subr.mxu0 0.0
    %2484 = vmatpush1.xpose.msra.mxu0 %v2211
    %2485 = vmatprep.subr.mxu0 0.0
    %2486 = vmatpush1.xpose.msra.mxu0 %v2212
    %2487 = vmatprep.subr.mxu0 0.0
    %2488 = vmatpush1.xpose.msra.mxu0 %v2213
    %2489 = vmatprep.subr.mxu0 0.0
    %2490 = vmatpush1.xpose.msra.mxu0 %v2214
    %2491 = vmatprep.subr.mxu0 0.0
    %2492 = vmatpush1.xpose.msra.mxu0 %v2215
    %2493 = vmatprep.subr.mxu0 0.0
    %2494 = vmatpush1.xpose.msra.mxu0 %v2216
    %2495 = vmatprep.subr.mxu0 0.0
    %2496 = vmatpush1.xpose.msra.mxu0 %v2217
    %2497 = vmatprep.subr.mxu0 0.0
    %2498 = vmatpush1.xpose.msra.mxu0 %v2218
    %2499 = vmatprep.subr.mxu0 0.0
    %2500 = vmatpush1.xpose.msra.mxu0 %v2219
    %2501 = vmatprep.subr.mxu0 0.0
    %2502 = vmatpush1.xpose.msra.mxu0 %v2220
    %2503 = vmatprep.subr.mxu0 0.0
    %2504 = vmatpush1.xpose.msra.mxu0 %v2221
    %2505 = vmatprep.subr.mxu0 0.0
    %2506 = vmatpush1.xpose.msra.mxu0 %v2222
    %2507 = vmatprep.mubr.f32.mxu0 0.0
    %2508 = vmatmul.mubr.f32.gmra.mrb[0].mxu0 %v2223
    %v2509 = vpop.f32.mrb[0].mxu0
    %v2510 = vadd.f32 %v2228, %v2509
    %v2511 = vpop.f32.mrb[0].mxu0
    %v2512 = vadd.f32 %v2228, %v2511
    %2513 = vdwg.mxu0
    %v2522 = vcombine.low %v2297, %v2299
    %v2523 = vcombine.low %v2368, %v2370
    %v2524 = vcombine.low %v2439, %v2441
    %v2525 = vcombine.low %v2510, %v2512
    %v2527 = vunpack.c.l.s4 1966171168
    %v2528 = vunpack.c.0.s8 %v2527
    %v2529 = vlaneseq
    %v2530 = vshrl.u32 %v2529, 7
    %v2531 = vsub.s32 %v2528, %v2530
    %v2532 = vrot.slane %v2522, %v2531
    %v2534 = vunpack.c.l.s4 1966171168
    %v2535 = vunpack.c.0.s8 %v2534
    %v2536 = vlaneseq
    %v2537 = vshrl.u32 %v2536, 7
    %v2538 = vsub.s32 %v2535, %v2537
    %v2539 = vrot.slane %v2523, %v2538
    %v2541 = vunpack.c.l.s4 1966171168
    %v2542 = vunpack.c.0.s8 %v2541
    %v2543 = vlaneseq
    %v2544 = vshrl.u32 %v2543, 7
    %v2545 = vsub.s32 %v2542, %v2544
    %v2546 = vrot.slane %v2524, %v2545
    %v2548 = vunpack.c.l.s4 1966171168
    %v2549 = vunpack.c.0.s8 %v2548
    %v2550 = vlaneseq
    %v2551 = vshrl.u32 %v2550, 7
    %v2552 = vsub.s32 %v2549, %v2551
    %v2553 = vrot.slane %v2525, %v2552
    %v2554 = vcombine.low %v2532, %v2539
    %v2555 = vcombine.low %v2546, %v2553
    %v2557 = vunpack.c.l.s4 1966171168
    %v2558 = vunpack.c.0.s8 %v2557
    %v2559 = vlaneseq
    %v2560 = vshrl.u32 %v2559, 7
    %v2561 = vsub.s32 %v2558, %v2560
    %v2562 = vrot.slane %v2554, %v2561
    %v2564 = vunpack.c.l.s4 1966171168
    %v2565 = vunpack.c.0.s8 %v2564
    %v2566 = vlaneseq
    %v2567 = vshrl.u32 %v2566, 7
    %v2568 = vsub.s32 %v2565, %v2567
    %v2569 = vrot.slane %v2555, %v2568
    %v2570 = vcombine.low %v2562, %v2569
    %2572 = vst [vmem:[#allocation2] sm:$0xff] %v2570
    // Predicated region
    $region10: #{critic_forward.1} parent=1 // pred_check
      _
    $region11: #{critic_forward.1} parent=1 // pred_check_branch
      %2574 = sbr.rel (0) target = $region13
    $region12: #{critic_forward.1} parent=1 // pred_region
      %s2576 = ssub.s32 128, 128
      %2577 = vsyncadd [#allocation3], %s2576
      %s2579 = sshll.u32 [#allocation2], 4
      %s2580 = int_to_ptr.vmem [resolvable:$true] %s2579
      %2582 = dma.vmem_to_hbm [thread:$0]  %s2580, 128, %s2, [#allocation3]
    $region13: #{critic_forward.1} parent=1 // pred_fallthru
      _
    // Predicated region
    $region14: #{critic_forward.1} parent=1 // pred_check
      _
    $region15: #{critic_forward.1} parent=1 // pred_check_branch
      %2584 = sbr.rel (0) target = $region17
    $region16: #{critic_forward.1} parent=1 // pred_region
      %2585 = dma.done [#allocation3], 128
    $region17: #{critic_forward.1} parent=1 // pred_fallthru
      _
    %2586 = vsyncpa [#allocation3], 1

</llo_original>
